<compile_context>
chip_gen: v5e
topology: v5e:2x2
jax: 0.10.0
libtpu: 0.0.40
codegen_flags: <defaults>
</compile_context>

<pallas_src>
import jax
import jax.numpy as jnp
from jax.experimental import pallas as pl
from jax.experimental.pallas import tpu as pltpu


def node_mlp_kernel(node_ref, recv_ref, edge_ref,
                    w1n_ref, w1e_ref, b1_ref, w2_ref, b2_ref, g_ref, beta_ref,
                    out_ref, acc_ref):
    i = pl.program_id(0)                  # node-tile index   ("parallel")
    e = pl.program_id(2)                  # edge-tile index   ("arbitrary", innermost)
    last_e = pl.num_programs(2) - 1
    tile_nodes, _ = acc_ref.shape
    tile_edges = recv_ref.shape[1]

    @pl.when(e == 0)
    def _init():
        acc_ref[...] = jnp.zeros_like(acc_ref)

    # One-hot scatter tile for this (node tile, edge tile), built in bf16
    # (values 0/1 are exact) so the scatter matmul runs natively on the MXU.
    row_ids = (jax.lax.broadcasted_iota(jnp.int32, (tile_nodes, tile_edges), 0)
               + i * tile_nodes)
    onehot = (row_ids == recv_ref[...]).astype(jnp.bfloat16)

    # Partial scatter_add over this edge tile as a bf16 MXU matmul, f32 acc.
    acc_ref[...] += jnp.dot(onehot, edge_ref[...],
                            preferred_element_type=jnp.float32)

    # Run the fused MLP + LayerNorm only once the edge reduction is complete.
    @pl.when(e == last_e)
    def _mlp():
        node = node_ref[...].astype(jnp.bfloat16)      # [tile_nodes, node_dim]
        edge_sum = acc_ref[...].astype(jnp.bfloat16)   # [tile_nodes, edge_dim]

        # concat([node, edge_sum]) @ w1 == node @ w1_node + edge_sum @ w1_edge
        h = (jnp.dot(node, w1n_ref[...], preferred_element_type=jnp.float32)
             + jnp.dot(edge_sum, w1e_ref[...], preferred_element_type=jnp.float32)
             + b1_ref[...])
        h = h * jax.nn.sigmoid(h)                      # SiLU, f32 on the VPU

        y = (jnp.dot(h.astype(jnp.bfloat16), w2_ref[...],
                     preferred_element_type=jnp.float32) + b2_ref[...])

        # LayerNorm over features (eps=1e-5, elementwise affine), f32.
        mean = jnp.mean(y, axis=-1, keepdims=True)
        var = jnp.mean((y - mean) ** 2, axis=-1, keepdims=True)
        out_ref[...] = ((y - mean) * jax.lax.rsqrt(var + 1e-5) * g_ref[...]
                        + beta_ref[...])


def _derive_vmem_limit_bytes():
    try:
        cap = int(pltpu.get_tpu_info().vmem_capacity_bytes)
    except Exception:
        cap = 64 * 1024 * 1024            # conservative fallback: v7x per-TC VMEM
    # ~20% headroom for compiler scratch / double buffers; never request more
    # than ~100 MiB even on 128-MiB parts (v5e/v6e).
    return min(int(cap * 0.8), 100 * 1024 * 1024)


def _pick_tile_nodes(n_nodes):
    cands = [t for t in (256, 128, 64, 32, 16, 8)
             if t <= n_nodes and n_nodes % t == 0]
    for t in cands:
        if n_nodes // t >= 2:   # keep >=2 "parallel" tiles so both v7x TCs get work
            return t
    return cands[0] if cands else n_nodes


def _pick_tile_edges(n_edges):
    for t in (1024, 512, 256, 128):
        if n_edges % t == 0:
            return t
    return n_edges              # full extent: always layout-legal


def node_mlp_forward(node, edge_index, edge_attr, params, *,
                     tile_nodes=None, tile_edges=None):
    """node: [B, n_nodes, node_dim] f32, edge_index: [2, n_edges] int,
    edge_attr: [B, n_edges, edge_dim] f32  ->  [B, n_nodes, out_dim] f32.

    NOTE: receiver indices must lie in [0, n_nodes); out-of-range receivers are
    silently dropped by the one-hot scatter (PyTorch scatter_add would error),
    so validate inputs upstream."""
    B, n_nodes, node_dim = node.shape
    _, n_edges, edge_dim = edge_attr.shape
    receiver = edge_index[1].reshape(1, n_edges).astype(jnp.int32)

    w1, b1, w2, b2, gamma, beta = (params["w1"], params["b1"], params["w2"],
                                   params["b2"], params["gamma"], params["beta"])
    hidden_dim = w1.shape[1]
    out_dim = w2.shape[1]

    # Split w1 so the kernel never materializes concat([node, edge_sum]); cast
    # matmul weights to bf16 once (MXU runs native bf16 with f32 accumulation).
    w1_node = w1[:node_dim].astype(jnp.bfloat16)
    w1_edge = w1[node_dim:].astype(jnp.bfloat16)
    w2_bf = w2.astype(jnp.bfloat16)
    # edge_attr in bf16 halves the edge-stream DMA, which is refetched once per
    # node tile (the dominant HBM traffic for large graphs).
    edge_attr_bf = edge_attr.astype(jnp.bfloat16)

    if tile_nodes is None:
        tile_nodes = _pick_tile_nodes(n_nodes)
    if tile_edges is None:
        tile_edges = _pick_tile_edges(n_edges)
    assert n_nodes % tile_nodes == 0, "n_nodes must be divisible by tile_nodes"
    assert tile_nodes == n_nodes or tile_nodes % 8 == 0, "(8,128) tiling rule"
    assert n_edges % tile_edges == 0, "n_edges must be divisible by tile_edges"
    assert tile_edges == n_edges or tile_edges % 128 == 0, "lane tiling rule"
    num_node_tiles = n_nodes // tile_nodes
    num_edge_tiles = n_edges // tile_edges

    grid_spec = pltpu.PrefetchScalarGridSpec(
        num_scalar_prefetch=0,
        # node tiles ("parallel")  x  batch ("arbitrary")  x  edge tiles
        # ("arbitrary", innermost so the edge_sum accumulator sweep is
        # contiguous for every (node tile, batch) pair).
        grid=(num_node_tiles, B, num_edge_tiles),
        in_specs=[
            # leading size-1 batch dim squeezed (None): kernel sees 2-D slabs.
            pl.BlockSpec((None, tile_nodes, node_dim), lambda i, b, e: (b, i, 0)),
            pl.BlockSpec((1, tile_edges), lambda i, b, e: (0, e)),            # receiver
            pl.BlockSpec((None, tile_edges, edge_dim), lambda i, b, e: (b, e, 0)),
            # Weights / biases: constant block index -> DMA'd once and kept
            # resident.  (pipeline_mode=pl.Buffered(1) would drop their second
            # buffer and free ~2 MiB at production dims; left at the default
            # double-buffering for portability across jax versions.)
            pl.BlockSpec((node_dim, hidden_dim), lambda i, b, e: (0, 0)),     # w1_node
            pl.BlockSpec((edge_dim, hidden_dim), lambda i, b, e: (0, 0)),     # w1_edge
            pl.BlockSpec((1, hidden_dim), lambda i, b, e: (0, 0)),            # b1
            pl.BlockSpec((hidden_dim, out_dim), lambda i, b, e: (0, 0)),      # w2
            pl.BlockSpec((1, out_dim), lambda i, b, e: (0, 0)),               # b2
            pl.BlockSpec((1, out_dim), lambda i, b, e: (0, 0)),               # gamma
            pl.BlockSpec((1, out_dim), lambda i, b, e: (0, 0)),               # beta
        ],
        out_specs=pl.BlockSpec((None, tile_nodes, out_dim), lambda i, b, e: (b, i, 0)),
        scratch_shapes=[
            pltpu.VMEM((tile_nodes, edge_dim), jnp.float32),   # edge_sum accumulator
        ],
    )

    return pl.pallas_call(
        node_mlp_kernel,
        out_shape=jax.ShapeDtypeStruct((B, n_nodes, out_dim), jnp.float32),
        grid_spec=grid_spec,
        compiler_params=pltpu.CompilerParams(
            dimension_semantics=("parallel", "arbitrary", "arbitrary"),
            vmem_limit_bytes=_derive_vmem_limit_bytes(),
        ),
    )(node, receiver, edge_attr_bf, w1_node, w1_edge, b1, w2_bf, b2, gamma, beta)


def reference_forward(node, edge_index, edge_attr, params):
    """Plain-JAX f32 reference (unsplit w1, f32 scatter) for correctness."""
    B, n_nodes, _ = node.shape
    receiver = edge_index[1]
    one_hot = (receiver[None, :] == jnp.arange(n_nodes)[:, None]).astype(jnp.float32)
    edge_sum = jnp.einsum("ne,bed->bnd", one_hot, edge_attr)
    x = jnp.concatenate([node, edge_sum], axis=-1)
    h = x @ params["w1"] + params["b1"]
    h = h * jax.nn.sigmoid(h)
    y = h @ params["w2"] + params["b2"]
    mean = jnp.mean(y, axis=-1, keepdims=True)
    var = jnp.mean((y - mean) ** 2, axis=-1, keepdims=True)
    return (y - mean) * jax.lax.rsqrt(var + 1e-5) * params["gamma"] + params["beta"]


if __name__ == "__main__":
    # Small functional shapes (production defaults are hidden=out=512 with
    # larger node/edge feature dims; those are lane-dense as well).
    B, n_nodes, node_dim = 2, 256, 16
    n_edges, edge_dim = 512, 16
    hidden_dim, out_dim = 128, 128
    in_dim = node_dim + edge_dim

    key = jax.random.PRNGKey(0)
    k = jax.random.split(key, 8)

    node = jax.random.normal(k[0], (B, n_nodes, node_dim), jnp.float32)
    edge_attr = jax.random.normal(k[1], (B, n_edges, edge_dim), jnp.float32)
    sender = jax.random.randint(k[2], (n_edges,), 0, n_nodes, jnp.int32)
    receiver = jax.random.randint(k[3], (n_edges,), 0, n_nodes, jnp.int32)
    edge_index = jnp.stack([sender, receiver], axis=0)

    # Deterministic parameter init (weights as (in, out); biases row vectors).
    params = {
        "w1": 0.05 * jax.random.normal(k[4], (in_dim, hidden_dim), jnp.float32),
        "b1": 0.05 * jax.random.normal(k[5], (1, hidden_dim), jnp.float32),
        "w2": 0.05 * jax.random.normal(k[6], (hidden_dim, out_dim), jnp.float32),
        "b2": 0.05 * jax.random.normal(k[7], (1, out_dim), jnp.float32),
        "gamma": jnp.ones((1, out_dim), jnp.float32),
        "beta": jnp.zeros((1, out_dim), jnp.float32),
    }

    # tile_nodes=128 -> 2 "parallel" node tiles (both v7x TCs busy);
    # tile_edges=256 -> 2 edge steps, exercising the accumulator path.
    out = node_mlp_forward(node, edge_index, edge_attr, params,
                           tile_nodes=128, tile_edges=256)
    out = jax.block_until_ready(out)

    ref = reference_forward(node, edge_index, edge_attr, params)
    assert out.shape == (B, n_nodes, out_dim)
    max_err = float(jnp.max(jnp.abs(out - ref)))
    # bf16 MXU inputs with f32 accumulation: loosened tolerance vs f32 reference.
    assert jnp.allclose(out, ref, rtol=5e-2, atol=5e-2), \
        f"mismatch vs reference (max abs err = {max_err})"

    print("KERNEL_OK")
</pallas_src>

<mosaic_0001>
module attributes {stable_mosaic.version = 11 : i64} {
  func.func @node_mlp_kernel(%arg0: i32, %arg1: i32, %arg2: i32, %arg3: memref<1x128x16xf32, #tpu.memory_space<vmem>>, %arg4: memref<1x256xi32, #tpu.memory_space<vmem>>, %arg5: memref<1x256x16xbf16, #tpu.memory_space<vmem>>, %arg6: memref<16x128xbf16, #tpu.memory_space<vmem>>, %arg7: memref<16x128xbf16, #tpu.memory_space<vmem>>, %arg8: memref<1x128xf32, #tpu.memory_space<vmem>>, %arg9: memref<128x128xbf16, #tpu.memory_space<vmem>>, %arg10: memref<1x128xf32, #tpu.memory_space<vmem>>, %arg11: memref<1x128xf32, #tpu.memory_space<vmem>>, %arg12: memref<1x128xf32, #tpu.memory_space<vmem>>, %arg13: memref<1x128x128xf32, #tpu.memory_space<vmem>>, %arg14: memref<128x16xf32, #tpu.memory_space<vmem>>) attributes {dimension_semantics = [#tpu.dimension_semantics<parallel>, #tpu.dimension_semantics<arbitrary>, #tpu.dimension_semantics<arbitrary>], iteration_bounds = array<i64: 2, 2, 2>, scalar_prefetch = 0 : i64, scratch_operands = 1 : i64, tpu.core_type = #tpu.core_type<tc>, window_params = [{transform_indices = @transform_0, window_bounds = array<i64: 1, 128, 16>}, {transform_indices = @transform_1, window_bounds = array<i64: 1, 256>}, {transform_indices = @transform_2, window_bounds = array<i64: 1, 256, 16>}, {pipeline_mode = #tpu.pipeline_mode<synchronous>, transform_indices = @transform_3, window_bounds = array<i64: 16, 128>}, {pipeline_mode = #tpu.pipeline_mode<synchronous>, transform_indices = @transform_4, window_bounds = array<i64: 16, 128>}, {pipeline_mode = #tpu.pipeline_mode<synchronous>, transform_indices = @transform_5, window_bounds = array<i64: 1, 128>}, {pipeline_mode = #tpu.pipeline_mode<synchronous>, transform_indices = @transform_6, window_bounds = array<i64: 128, 128>}, {pipeline_mode = #tpu.pipeline_mode<synchronous>, transform_indices = @transform_7, window_bounds = array<i64: 1, 128>}, {pipeline_mode = #tpu.pipeline_mode<synchronous>, transform_indices = @transform_8, window_bounds = array<i64: 1, 128>}, {pipeline_mode = #tpu.pipeline_mode<synchronous>, transform_indices = @transform_9, window_bounds = array<i64: 1, 128>}, {transform_indices = @transform_10, window_bounds = array<i64: 1, 128, 128>}]} {
    %c0_i32 = arith.constant 0 : i32
    %0 = arith.cmpi eq, %arg2, %c0_i32 : i32
    %1 = arith.extui %0 : i1 to i32
    %c0_i32_0 = arith.constant 0 : i32
    %2 = arith.cmpi ne, %1, %c0_i32_0 : i32
    scf.if %2 {
      %cst_10 = arith.constant 0.000000e+00 : f32
      %22 = vector.broadcast %cst_10 : f32 to vector<128x16xf32>
      %c0_11 = arith.constant 0 : index
      %c0_12 = arith.constant 0 : index
      %23 = vector.load %arg14[%c0_11, %c0_12] : memref<128x16xf32, #tpu.memory_space<vmem>>, vector<128x16xf32>
      tpu.vector_store %arg14[%c0_11, %c0_12], %22 {strides = array<i32>} : memref<128x16xf32, #tpu.memory_space<vmem>>, vector<128x16xf32>,
    } else {
    }
    %3 = tpu.iota {dimensions = array<i32: 0>} : vector<128x256xi32>
    %c128_i32 = arith.constant 128 : i32
    %4 = arith.muli %arg0, %c128_i32 : i32
    %5 = vector.broadcast %4 : i32 to vector<128x256xi32>
    %6 = arith.addi %3, %5 : vector<128x256xi32>
    %c0 = arith.constant 0 : index
    %c0_1 = arith.constant 0 : index
    %7 = vector.load %arg4[%c0, %c0_1] : memref<1x256xi32, #tpu.memory_space<vmem>>, vector<1x256xi32>
    %8 = vector.broadcast %7 : vector<1x256xi32> to vector<128x256xi32>
    %9 = arith.cmpi eq, %6, %8 : vector<128x256xi32>
    %10 = arith.extui %9 : vector<128x256xi1> to vector<128x256xi32>
    %11 = arith.sitofp %10 : vector<128x256xi32> to vector<128x256xf32>
    %12 = arith.truncf %11 : vector<128x256xf32> to vector<128x256xbf16>
    %c0_2 = arith.constant 0 : index
    %c0_3 = arith.constant 0 : index
    %13 = vector.load %arg14[%c0_2, %c0_3] : memref<128x16xf32, #tpu.memory_space<vmem>>, vector<128x16xf32>
    %c0_4 = arith.constant 0 : index
    %c0_5 = arith.constant 0 : index
    %c0_6 = arith.constant 0 : index
    %14 = vector.load %arg5[%c0_4, %c0_5, %c0_6] : memref<1x256x16xbf16, #tpu.memory_space<vmem>>, vector<1x256x16xbf16>
    %15 = vector.shape_cast %14 : vector<1x256x16xbf16> to vector<256x16xbf16>
    %cst = arith.constant dense<0.000000e+00> : vector<128x16xf32>
    %16 = tpu.matmul %12, %15, %cst {dimension_numbers = #tpu.dot_dimension_numbers<[1], [0], [0], [1], [0, 0, 1, 1], [], []>} : vector<128x256xbf16>, vector<256x16xbf16>, vector<128x16xf32> -> vector<128x16xf32>
    %17 = arith.addf %13, %16 : vector<128x16xf32>
    %c0_7 = arith.constant 0 : index
    %c0_8 = arith.constant 0 : index
    %18 = vector.load %arg14[%c0_7, %c0_8] : memref<128x16xf32, #tpu.memory_space<vmem>>, vector<128x16xf32>
    tpu.vector_store %arg14[%c0_7, %c0_8], %17 {strides = array<i32>} : memref<128x16xf32, #tpu.memory_space<vmem>>, vector<128x16xf32>,
    %c1_i32 = arith.constant 1 : i32
    %19 = arith.cmpi eq, %arg2, %c1_i32 : i32
    %20 = arith.extui %19 : i1 to i32
    %c0_i32_9 = arith.constant 0 : i32
    %21 = arith.cmpi ne, %20, %c0_i32_9 : i32
    scf.if %21 {
      %c0_10 = arith.constant 0 : index
      %c0_11 = arith.constant 0 : index
      %c0_12 = arith.constant 0 : index
      %22 = vector.load %arg3[%c0_10, %c0_11, %c0_12] : memref<1x128x16xf32, #tpu.memory_space<vmem>>, vector<1x128x16xf32>
      %23 = vector.shape_cast %22 : vector<1x128x16xf32> to vector<128x16xf32>
      %24 = arith.truncf %23 : vector<128x16xf32> to vector<128x16xbf16>
      %c0_13 = arith.constant 0 : index
      %c0_14 = arith.constant 0 : index
      %25 = vector.load %arg14[%c0_13, %c0_14] : memref<128x16xf32, #tpu.memory_space<vmem>>, vector<128x16xf32>
      %26 = arith.truncf %25 : vector<128x16xf32> to vector<128x16xbf16>
      %c0_15 = arith.constant 0 : index
      %c0_16 = arith.constant 0 : index
      %27 = vector.load %arg6[%c0_15, %c0_16] : memref<16x128xbf16, #tpu.memory_space<vmem>>, vector<16x128xbf16>
      %cst_17 = arith.constant dense<0.000000e+00> : vector<128x128xf32>
      %28 = tpu.matmul %24, %27, %cst_17 {dimension_numbers = #tpu.dot_dimension_numbers<[1], [0], [0], [1], [0, 0, 1, 1], [], []>} : vector<128x16xbf16>, vector<16x128xbf16>, vector<128x128xf32> -> vector<128x128xf32>
      %c0_18 = arith.constant 0 : index
      %c0_19 = arith.constant 0 : index
      %29 = vector.load %arg7[%c0_18, %c0_19] : memref<16x128xbf16, #tpu.memory_space<vmem>>, vector<16x128xbf16>
      %cst_20 = arith.constant dense<0.000000e+00> : vector<128x128xf32>
      %30 = tpu.matmul %26, %29, %cst_20 {dimension_numbers = #tpu.dot_dimension_numbers<[1], [0], [0], [1], [0, 0, 1, 1], [], []>} : vector<128x16xbf16>, vector<16x128xbf16>, vector<128x128xf32> -> vector<128x128xf32>
      %31 = arith.addf %28, %30 : vector<128x128xf32>
      %c0_21 = arith.constant 0 : index
      %c0_22 = arith.constant 0 : index
      %32 = vector.load %arg8[%c0_21, %c0_22] : memref<1x128xf32, #tpu.memory_space<vmem>>, vector<1x128xf32>
      %33 = vector.broadcast %32 : vector<1x128xf32> to vector<128x128xf32>
      %34 = arith.addf %31, %33 : vector<128x128xf32>
      %35 = arith.negf %34 : vector<128x128xf32>
      %36 = math.exp %35 : vector<128x128xf32>
      %cst_23 = arith.constant 1.000000e+00 : f32
      %37 = vector.broadcast %cst_23 : f32 to vector<128x128xf32>
      %38 = arith.addf %37, %36 : vector<128x128xf32>
      %39 = arith.divf %37, %38 : vector<128x128xf32>
      %40 = arith.mulf %34, %39 : vector<128x128xf32>
      %41 = arith.truncf %40 : vector<128x128xf32> to vector<128x128xbf16>
      %c0_24 = arith.constant 0 : index
      %c0_25 = arith.constant 0 : index
      %42 = vector.load %arg9[%c0_24, %c0_25] : memref<128x128xbf16, #tpu.memory_space<vmem>>, vector<128x128xbf16>
      %cst_26 = arith.constant dense<0.000000e+00> : vector<128x128xf32>
      %43 = tpu.matmul %41, %42, %cst_26 {dimension_numbers = #tpu.dot_dimension_numbers<[1], [0], [0], [1], [0, 0, 1, 1], [], []>} : vector<128x128xbf16>, vector<128x128xbf16>, vector<128x128xf32> -> vector<128x128xf32>
      %c0_27 = arith.constant 0 : index
      %c0_28 = arith.constant 0 : index
      %44 = vector.load %arg10[%c0_27, %c0_28] : memref<1x128xf32, #tpu.memory_space<vmem>>, vector<1x128xf32>
      %45 = vector.broadcast %44 : vector<1x128xf32> to vector<128x128xf32>
      %46 = arith.addf %43, %45 : vector<128x128xf32>
      %cst_29 = arith.constant dense<0.000000e+00> : vector<128xf32>
      %47 = vector.multi_reduction <add>, %46, %cst_29 [1] : vector<128x128xf32> to vector<128xf32>
      %48 = vector.shape_cast %47 : vector<128xf32> to vector<128x1xf32>
      %cst_30 = arith.constant 1.280000e+02 : f32
      %49 = vector.broadcast %cst_30 : f32 to vector<128x1xf32>
      %50 = arith.divf %48, %49 : vector<128x1xf32>
      %51 = vector.broadcast %50 : vector<128x1xf32> to vector<128x128xf32>
      %52 = arith.subf %46, %51 : vector<128x128xf32>
      %53 = arith.mulf %52, %52 : vector<128x128xf32>
      %cst_31 = arith.constant dense<0.000000e+00> : vector<128xf32>
      %54 = vector.multi_reduction <add>, %53, %cst_31 [1] : vector<128x128xf32> to vector<128xf32>
      %55 = vector.shape_cast %54 : vector<128xf32> to vector<128x1xf32>
      %cst_32 = arith.constant 1.280000e+02 : f32
      %56 = vector.broadcast %cst_32 : f32 to vector<128x1xf32>
      %57 = arith.divf %55, %56 : vector<128x1xf32>
      %58 = vector.broadcast %50 : vector<128x1xf32> to vector<128x128xf32>
      %59 = arith.subf %46, %58 : vector<128x128xf32>
      %cst_33 = arith.constant 9.99999974E-6 : f32
      %60 = vector.broadcast %cst_33 : f32 to vector<128x1xf32>
      %61 = arith.addf %57, %60 : vector<128x1xf32>
      %62 = math.rsqrt %61 : vector<128x1xf32>
      %63 = vector.broadcast %62 : vector<128x1xf32> to vector<128x128xf32>
      %64 = arith.mulf %59, %63 : vector<128x128xf32>
      %c0_34 = arith.constant 0 : index
      %c0_35 = arith.constant 0 : index
      %65 = vector.load %arg11[%c0_34, %c0_35] : memref<1x128xf32, #tpu.memory_space<vmem>>, vector<1x128xf32>
      %66 = vector.broadcast %65 : vector<1x128xf32> to vector<128x128xf32>
      %67 = arith.mulf %64, %66 : vector<128x128xf32>
      %c0_36 = arith.constant 0 : index
      %c0_37 = arith.constant 0 : index
      %68 = vector.load %arg12[%c0_36, %c0_37] : memref<1x128xf32, #tpu.memory_space<vmem>>, vector<1x128xf32>
      %69 = vector.broadcast %68 : vector<1x128xf32> to vector<128x128xf32>
      %70 = arith.addf %67, %69 : vector<128x128xf32>
      %c0_38 = arith.constant 0 : index
      %c0_39 = arith.constant 0 : index
      %c0_40 = arith.constant 0 : index
      %71 = vector.load %arg13[%c0_38, %c0_39, %c0_40] : memref<1x128x128xf32, #tpu.memory_space<vmem>>, vector<1x128x128xf32>
      %72 = vector.shape_cast %71 : vector<1x128x128xf32> to vector<128x128xf32>
      %73 = vector.shape_cast %70 : vector<128x128xf32> to vector<1x128x128xf32>
      tpu.vector_store %arg13[%c0_38, %c0_39, %c0_40], %73 {strides = array<i32>} : memref<1x128x128xf32, #tpu.memory_space<vmem>>, vector<1x128x128xf32>,
    } else {
    }
    return
  }
  func.func @transform_0(%arg0: i32, %arg1: i32, %arg2: i32) -> (i32, i32, i32) {
    %c0_i32 = arith.constant 0 : i32
    %c0_i32_0 = arith.constant 0 : i32
    return %arg1, %arg0, %c0_i32 : i32, i32, i32
  }
  func.func @transform_1(%arg0: i32, %arg1: i32, %arg2: i32) -> (i32, i32) {
    %c0_i32 = arith.constant 0 : i32
    %c0_i32_0 = arith.constant 0 : i32
    return %c0_i32, %arg2 : i32, i32
  }
  func.func @transform_2(%arg0: i32, %arg1: i32, %arg2: i32) -> (i32, i32, i32) {
    %c0_i32 = arith.constant 0 : i32
    %c0_i32_0 = arith.constant 0 : i32
    return %arg1, %arg2, %c0_i32 : i32, i32, i32
  }
  func.func @transform_3(%arg0: i32, %arg1: i32, %arg2: i32) -> (i32, i32) {
    %c0_i32 = arith.constant 0 : i32
    %c0_i32_0 = arith.constant 0 : i32
    %c0_i32_1 = arith.constant 0 : i32
    return %c0_i32, %c0_i32_0 : i32, i32
  }
  func.func @transform_4(%arg0: i32, %arg1: i32, %arg2: i32) -> (i32, i32) {
    %c0_i32 = arith.constant 0 : i32
    %c0_i32_0 = arith.constant 0 : i32
    %c0_i32_1 = arith.constant 0 : i32
    return %c0_i32, %c0_i32_0 : i32, i32
  }
  func.func @transform_5(%arg0: i32, %arg1: i32, %arg2: i32) -> (i32, i32) {
    %c0_i32 = arith.constant 0 : i32
    %c0_i32_0 = arith.constant 0 : i32
    %c0_i32_1 = arith.constant 0 : i32
    return %c0_i32, %c0_i32_0 : i32, i32
  }
  func.func @transform_6(%arg0: i32, %arg1: i32, %arg2: i32) -> (i32, i32) {
    %c0_i32 = arith.constant 0 : i32
    %c0_i32_0 = arith.constant 0 : i32
    %c0_i32_1 = arith.constant 0 : i32
    return %c0_i32, %c0_i32_0 : i32, i32
  }
  func.func @transform_7(%arg0: i32, %arg1: i32, %arg2: i32) -> (i32, i32) {
    %c0_i32 = arith.constant 0 : i32
    %c0_i32_0 = arith.constant 0 : i32
    %c0_i32_1 = arith.constant 0 : i32
    return %c0_i32, %c0_i32_0 : i32, i32
  }
  func.func @transform_8(%arg0: i32, %arg1: i32, %arg2: i32) -> (i32, i32) {
    %c0_i32 = arith.constant 0 : i32
    %c0_i32_0 = arith.constant 0 : i32
    %c0_i32_1 = arith.constant 0 : i32
    return %c0_i32, %c0_i32_0 : i32, i32
  }
  func.func @transform_9(%arg0: i32, %arg1: i32, %arg2: i32) -> (i32, i32) {
    %c0_i32 = arith.constant 0 : i32
    %c0_i32_0 = arith.constant 0 : i32
    %c0_i32_1 = arith.constant 0 : i32
    return %c0_i32, %c0_i32_0 : i32, i32
  }
  func.func @transform_10(%arg0: i32, %arg1: i32, %arg2: i32) -> (i32, i32, i32) {
    %c0_i32 = arith.constant 0 : i32
    %c0_i32_0 = arith.constant 0 : i32
    return %arg1, %arg0, %c0_i32 : i32, i32, i32
  }
}

</mosaic_0001>

<llo_original>
// kernel: tpu_custom_call.1
$region0: #{tpu_custom_call.1}
  #allocation0 [shape = 'u32[]', space=smem, size = 0x4, offset = 0x4, fixed_abs, tag = 'smem constant byte address 0x4 - core index']
  #allocation1 [shape = 'u32[72,128]{1,0:T(1,128)}', space=vmem, size = 0x9000, scoped, tag = 'internal scratch']
  #allocation2 [shape = 'f32[128,16]{1,0:T(8,128)}', space=vmem, size = 0x10000, scoped, tag = 'scratch operand']
  %s0 = inlined_call_operand.vmem [shape: f32[2,256,16], index: 0, kind: input, shape index: {}]
  %s1 = inlined_call_operand.vmem [shape: s32[1,512], index: 1, kind: input, shape index: {}]
  %s2 = inlined_call_operand.vmem [shape: bf16[2,512,16], index: 2, kind: input, shape index: {}]
  %s3 = inlined_call_operand.vmem [shape: bf16[16,128], index: 3, kind: input, shape index: {}]
  %s4 = inlined_call_operand.vmem [shape: bf16[16,128], index: 4, kind: input, shape index: {}]
  %s5 = inlined_call_operand.vmem [shape: f32[1,128], index: 5, kind: input, shape index: {}]
  %s6 = inlined_call_operand.vmem [shape: bf16[128,128], index: 6, kind: input, shape index: {}]
  %s7 = inlined_call_operand.vmem [shape: f32[1,128], index: 7, kind: input, shape index: {}]
  %s8 = inlined_call_operand.vmem [shape: f32[1,128], index: 8, kind: input, shape index: {}]
  %s9 = inlined_call_operand.vmem [shape: f32[1,128], index: 9, kind: input, shape index: {}]
  %s10 = inlined_call_operand.hbm [shape: f32[2,256,128], index: 10, kind: output, shape index: {}]
  %s11 = sld [smem:[#allocation0]]
  $region81: #{tpu_custom_call.1} parent=0
    _
  %s13 = ssub.s32 1, %s11
  %s14 = scalar_select 0, %s13, %s11
  $region1: #{tpu_custom_call.1} parent=0
    #allocation3 [shape = 'u8[131072]{0}', space=vmem, size = 0x20000, scoped, tag = 'output window, operand 0']
    #allocation4 [shape = 's32[2]{0}', space=sflag, size = 0x8, scoped, tag = 'scoped memory for tpu_custom_call.1']
    %15 = vsyncpa [#allocation4], 0
    %s16 = scalar_lea.sflag [#allocation4], 1
    %17 = vsyncpa %s16, 0
    loop: start=0, step=1, limit=10
    $region2: #{tpu_custom_call.1} parent=1 // loop_pre_header
      _
    $region3: #{tpu_custom_call.1} parent=1 // loop_header
      %s19 = sphi 0, %s23
      %p20 = scmp.ge.s32.totalorder %s19, 10
      %s26 = sphi 0, %s45
      %s27 = sphi 0, %s41
      %s28 = sphi 0, %s37
      %s29 = sphi 0, %s26
      %s30 = sphi 0, %s27
      %s31 = sphi 0, %s28
      %s32 = sphi 0, %s29
      %s33 = sphi 0, %s30
      %s34 = sphi 0, %s31
      %s50 = sphi 0, %s52
      %s53 = sphi 0, %s50
      %s54 = sphi 0, %s53
      %s70 = sphi 0, %s54
      %s76 = sphi 0, %s78
      %s79 = sphi 0, %s76
      %s80 = sphi 0, %s79
      %s96 = sphi 0, %s80
      %s104 = sphi 0, %s106
      %s107 = sphi 0, %s104
      %s108 = sphi 0, %s107
      %s124 = sphi 0, %s108
      %s128 = sphi 0, %s128
      %s130 = sphi 0, %s128
      %s131 = sphi 0, %s130
      %s145 = sphi 0, %s131
      %s149 = sphi 0, %s149
      %s151 = sphi 0, %s149
      %s152 = sphi 0, %s151
      %s166 = sphi 0, %s152
      %s170 = sphi 0, %s170
      %s172 = sphi 0, %s170
      %s173 = sphi 0, %s172
      %s187 = sphi 0, %s173
      %s191 = sphi 0, %s191
      %s193 = sphi 0, %s191
      %s194 = sphi 0, %s193
      %s208 = sphi 0, %s194
      %s212 = sphi 0, %s212
      %s214 = sphi 0, %s212
      %s215 = sphi 0, %s214
      %s229 = sphi 0, %s215
      %s233 = sphi 0, %s233
      %s235 = sphi 0, %s233
      %s236 = sphi 0, %s235
      %s250 = sphi 0, %s236
      %s254 = sphi 0, %s254
      %s256 = sphi 0, %s254
      %s257 = sphi 0, %s256
      %s271 = sphi 0, %s257
      %s279 = sphi 0, %s281
      %s282 = sphi 0, %s279
      %s283 = sphi 0, %s282
      %s299 = sphi 0, %s283
    $region4: #{tpu_custom_call.1} parent=1 // loop_header_branch
      %22 = sbr.rel (%p20) target = $region8
    $region5: #{tpu_custom_call.1} parent=1 // loop_body
      %s24 = ssub.s32 %s19, 1
      %s25 = ssub.s32 %s19, 2
      %s35 = sadd.s32 1, %s28
      %p36 = scmp.ge.s32.totalorder %s35, 2
      %s37 = scalar_select %p36, 0, %s35
      %s38 = sadd.s32 1, %s27
      %s39 = scalar_select %p36, %s38, %s27
      %p40 = scmp.ge.s32.totalorder %s39, 2
      %s41 = scalar_select %p40, 0, %s39
      %s42 = sadd.s32 1, %s26
      %s43 = scalar_select %p40, %s42, %s26
      %p44 = scmp.ge.s32.totalorder %s43, 2
      %s45 = scalar_select %p44, 0, %s43
      %s46 = ssub.s32 %s27, %s41
      %s47 = ssub.s32 %s26, %s45
      %s48 = sor.u32 %s46, %s47
      %p49 = scmp.eq.s32.totalorder %s48, 0
      %s51 = sadd.s32 %s50, 1
      %s52 = scalar_select %p49, %s50, %s51
      %p55 = pneg %p49
      %p56 = scmp.eq.s32.totalorder %s19, 7
      %p57 = por %p55, %p56
      %p58 = scmp.ne.s32.totalorder %s50, %s53
      %p59 = scmp.eq.s32.totalorder %s19, 0
      %p60 = por %p58, %p59
      %p61 = scmp.ne.s32.totalorder %s50, %s53
      %p62 = scmp.eq.s32.totalorder %s24, 7
      %p63 = por %p61, %p62
      %p64 = scmp.ne.s32.totalorder %s53, %s54
      %p65 = scmp.eq.s32.totalorder %s24, 0
      %p66 = por %p64, %p65
      %p67 = scmp.ne.s32.totalorder %s53, %s54
      %p68 = scmp.eq.s32.totalorder %s25, 7
      %p69 = por %p67, %p68
      %p71 = scmp.ne.s32.totalorder %s54, %s70
      %p72 = scmp.eq.s32.totalorder %s25, 0
      %p73 = por %p71, %p72
      %s74 = ssub.s32 %s28, %s37
      %p75 = scmp.eq.s32.totalorder %s74, 0
      %s77 = sadd.s32 %s76, 1
      %s78 = scalar_select %p75, %s76, %s77
      %p81 = pneg %p75
      %p82 = scmp.eq.s32.totalorder %s19, 7
      %p83 = por %p81, %p82
      %p84 = scmp.ne.s32.totalorder %s76, %s79
      %p85 = scmp.eq.s32.totalorder %s19, 0
      %p86 = por %p84, %p85
      %p87 = scmp.ne.s32.totalorder %s76, %s79
      %p88 = scmp.eq.s32.totalorder %s24, 7
      %p89 = por %p87, %p88
      %p90 = scmp.ne.s32.totalorder %s79, %s80
      %p91 = scmp.eq.s32.totalorder %s24, 0
      %p92 = por %p90, %p91
      %p93 = scmp.ne.s32.totalorder %s79, %s80
      %p94 = scmp.eq.s32.totalorder %s25, 7
      %p95 = por %p93, %p94
      %p97 = scmp.ne.s32.totalorder %s80, %s96
      %p98 = scmp.eq.s32.totalorder %s25, 0
      %p99 = por %p97, %p98
      %s100 = ssub.s32 %s27, %s41
      %s101 = ssub.s32 %s28, %s37
      %s102 = sor.u32 %s100, %s101
      %p103 = scmp.eq.s32.totalorder %s102, 0
      %s105 = sadd.s32 %s104, 1
      %s106 = scalar_select %p103, %s104, %s105
      %p109 = pneg %p103
      %p110 = scmp.eq.s32.totalorder %s19, 7
      %p111 = por %p109, %p110
      %p112 = scmp.ne.s32.totalorder %s104, %s107
      %p113 = scmp.eq.s32.totalorder %s19, 0
      %p114 = por %p112, %p113
      %p115 = scmp.ne.s32.totalorder %s104, %s107
      %p116 = scmp.eq.s32.totalorder %s24, 7
      %p117 = por %p115, %p116
      %p118 = scmp.ne.s32.totalorder %s107, %s108
      %p119 = scmp.eq.s32.totalorder %s24, 0
      %p120 = por %p118, %p119
      %p121 = scmp.ne.s32.totalorder %s107, %s108
      %p122 = scmp.eq.s32.totalorder %s25, 7
      %p123 = por %p121, %p122
      %p125 = scmp.ne.s32.totalorder %s108, %s124
      %p126 = scmp.eq.s32.totalorder %s25, 0
      %p127 = por %p125, %p126
      %s129 = sadd.s32 %s128, 1
      %p132 = scmp.eq.s32.totalorder %s19, 7
      %p133 = scmp.ne.s32.totalorder %s128, %s130
      %p134 = scmp.eq.s32.totalorder %s19, 0
      %p135 = por %p133, %p134
      %p136 = scmp.ne.s32.totalorder %s128, %s130
      %p137 = scmp.eq.s32.totalorder %s24, 7
      %p138 = por %p136, %p137
      %p139 = scmp.ne.s32.totalorder %s130, %s131
      %p140 = scmp.eq.s32.totalorder %s24, 0
      %p141 = por %p139, %p140
      %p142 = scmp.ne.s32.totalorder %s130, %s131
      %p143 = scmp.eq.s32.totalorder %s25, 7
      %p144 = por %p142, %p143
      %p146 = scmp.ne.s32.totalorder %s131, %s145
      %p147 = scmp.eq.s32.totalorder %s25, 0
      %p148 = por %p146, %p147
      %s150 = sadd.s32 %s149, 1
      %p153 = scmp.eq.s32.totalorder %s19, 7
      %p154 = scmp.ne.s32.totalorder %s149, %s151
      %p155 = scmp.eq.s32.totalorder %s19, 0
      %p156 = por %p154, %p155
      %p157 = scmp.ne.s32.totalorder %s149, %s151
      %p158 = scmp.eq.s32.totalorder %s24, 7
      %p159 = por %p157, %p158
      %p160 = scmp.ne.s32.totalorder %s151, %s152
      %p161 = scmp.eq.s32.totalorder %s24, 0
      %p162 = por %p160, %p161
      %p163 = scmp.ne.s32.totalorder %s151, %s152
      %p164 = scmp.eq.s32.totalorder %s25, 7
      %p165 = por %p163, %p164
      %p167 = scmp.ne.s32.totalorder %s152, %s166
      %p168 = scmp.eq.s32.totalorder %s25, 0
      %p169 = por %p167, %p168
      %s171 = sadd.s32 %s170, 1
      %p174 = scmp.eq.s32.totalorder %s19, 7
      %p175 = scmp.ne.s32.totalorder %s170, %s172
      %p176 = scmp.eq.s32.totalorder %s19, 0
      %p177 = por %p175, %p176
      %p178 = scmp.ne.s32.totalorder %s170, %s172
      %p179 = scmp.eq.s32.totalorder %s24, 7
      %p180 = por %p178, %p179
      %p181 = scmp.ne.s32.totalorder %s172, %s173
      %p182 = scmp.eq.s32.totalorder %s24, 0
      %p183 = por %p181, %p182
      %p184 = scmp.ne.s32.totalorder %s172, %s173
      %p185 = scmp.eq.s32.totalorder %s25, 7
      %p186 = por %p184, %p185
      %p188 = scmp.ne.s32.totalorder %s173, %s187
      %p189 = scmp.eq.s32.totalorder %s25, 0
      %p190 = por %p188, %p189
      %s192 = sadd.s32 %s191, 1
      %p195 = scmp.eq.s32.totalorder %s19, 7
      %p196 = scmp.ne.s32.totalorder %s191, %s193
      %p197 = scmp.eq.s32.totalorder %s19, 0
      %p198 = por %p196, %p197
      %p199 = scmp.ne.s32.totalorder %s191, %s193
      %p200 = scmp.eq.s32.totalorder %s24, 7
      %p201 = por %p199, %p200
      %p202 = scmp.ne.s32.totalorder %s193, %s194
      %p203 = scmp.eq.s32.totalorder %s24, 0
      %p204 = por %p202, %p203
      %p205 = scmp.ne.s32.totalorder %s193, %s194
      %p206 = scmp.eq.s32.totalorder %s25, 7
      %p207 = por %p205, %p206
      %p209 = scmp.ne.s32.totalorder %s194, %s208
      %p210 = scmp.eq.s32.totalorder %s25, 0
      %p211 = por %p209, %p210
      %s213 = sadd.s32 %s212, 1
      %p216 = scmp.eq.s32.totalorder %s19, 7
      %p217 = scmp.ne.s32.totalorder %s212, %s214
      %p218 = scmp.eq.s32.totalorder %s19, 0
      %p219 = por %p217, %p218
      %p220 = scmp.ne.s32.totalorder %s212, %s214
      %p221 = scmp.eq.s32.totalorder %s24, 7
      %p222 = por %p220, %p221
      %p223 = scmp.ne.s32.totalorder %s214, %s215
      %p224 = scmp.eq.s32.totalorder %s24, 0
      %p225 = por %p223, %p224
      %p226 = scmp.ne.s32.totalorder %s214, %s215
      %p227 = scmp.eq.s32.totalorder %s25, 7
      %p228 = por %p226, %p227
      %p230 = scmp.ne.s32.totalorder %s215, %s229
      %p231 = scmp.eq.s32.totalorder %s25, 0
      %p232 = por %p230, %p231
      %s234 = sadd.s32 %s233, 1
      %p237 = scmp.eq.s32.totalorder %s19, 7
      %p238 = scmp.ne.s32.totalorder %s233, %s235
      %p239 = scmp.eq.s32.totalorder %s19, 0
      %p240 = por %p238, %p239
      %p241 = scmp.ne.s32.totalorder %s233, %s235
      %p242 = scmp.eq.s32.totalorder %s24, 7
      %p243 = por %p241, %p242
      %p244 = scmp.ne.s32.totalorder %s235, %s236
      %p245 = scmp.eq.s32.totalorder %s24, 0
      %p246 = por %p244, %p245
      %p247 = scmp.ne.s32.totalorder %s235, %s236
      %p248 = scmp.eq.s32.totalorder %s25, 7
      %p249 = por %p247, %p248
      %p251 = scmp.ne.s32.totalorder %s236, %s250
      %p252 = scmp.eq.s32.totalorder %s25, 0
      %p253 = por %p251, %p252
      %s255 = sadd.s32 %s254, 1
      %p258 = scmp.eq.s32.totalorder %s19, 7
      %p259 = scmp.ne.s32.totalorder %s254, %s256
      %p260 = scmp.eq.s32.totalorder %s19, 0
      %p261 = por %p259, %p260
      %p262 = scmp.ne.s32.totalorder %s254, %s256
      %p263 = scmp.eq.s32.totalorder %s24, 7
      %p264 = por %p262, %p263
      %p265 = scmp.ne.s32.totalorder %s256, %s257
      %p266 = scmp.eq.s32.totalorder %s24, 0
      %p267 = por %p265, %p266
      %p268 = scmp.ne.s32.totalorder %s256, %s257
      %p269 = scmp.eq.s32.totalorder %s25, 7
      %p270 = por %p268, %p269
      %p272 = scmp.ne.s32.totalorder %s257, %s271
      %p273 = scmp.eq.s32.totalorder %s25, 0
      %p274 = por %p272, %p273
      %s275 = ssub.s32 %s27, %s41
      %s276 = ssub.s32 %s26, %s45
      %s277 = sor.u32 %s275, %s276
      %p278 = scmp.eq.s32.totalorder %s277, 0
      %s280 = sadd.s32 %s279, 1
      %s281 = scalar_select %p278, %s279, %s280
      %p284 = pneg %p278
      %p285 = scmp.eq.s32.totalorder %s19, 7
      %p286 = por %p284, %p285
      %p287 = scmp.ne.s32.totalorder %s279, %s282
      %p288 = scmp.eq.s32.totalorder %s19, 0
      %p289 = por %p287, %p288
      %p290 = scmp.ne.s32.totalorder %s279, %s282
      %p291 = scmp.eq.s32.totalorder %s24, 7
      %p292 = por %p290, %p291
      %p293 = scmp.ne.s32.totalorder %s282, %s283
      %p294 = scmp.eq.s32.totalorder %s24, 0
      %p295 = por %p293, %p294
      %p296 = scmp.ne.s32.totalorder %s282, %s283
      %p297 = scmp.eq.s32.totalorder %s25, 7
      %p298 = por %p296, %p297
      %p300 = scmp.ne.s32.totalorder %s283, %s299
      %p301 = scmp.eq.s32.totalorder %s25, 0
      %p302 = por %p300, %p301
      %p303 = scmp.le.s32.totalorder 1, %s19
      %p304 = scmp.lt.s32.totalorder %s19, 9
      %p305 = pnand %p303, %p304
      %p306 = pneg %p305
      // Predicated region
      $region9: #{tpu_custom_call.1} parent=5 // pred_check
        _
      $region10: #{tpu_custom_call.1} parent=5 // pred_check_branch
        %308 = sbr.rel (%p305) target = $region12
      $region11: #{tpu_custom_call.1} parent=5 // pred_region
        %s309 = ssub.s32 %s19, 1
        // Predicated region
        $region13: #{tpu_custom_call.1} parent=11 // pred_check
          %p310 = pneg %p141
        $region14: #{tpu_custom_call.1} parent=11 // pred_check_branch
          %312 = sbr.rel (%p310) target = $region16
        $region15: #{tpu_custom_call.1} parent=11 // pred_region
          _
        $region16: #{tpu_custom_call.1} parent=11 // pred_fallthru
          _
        // Predicated region
        $region17: #{tpu_custom_call.1} parent=11 // pred_check
          %p313 = pneg %p162
        $region18: #{tpu_custom_call.1} parent=11 // pred_check_branch
          %315 = sbr.rel (%p313) target = $region20
        $region19: #{tpu_custom_call.1} parent=11 // pred_region
          _
        $region20: #{tpu_custom_call.1} parent=11 // pred_fallthru
          _
        // Predicated region
        $region21: #{tpu_custom_call.1} parent=11 // pred_check
          %p316 = pneg %p183
        $region22: #{tpu_custom_call.1} parent=11 // pred_check_branch
          %318 = sbr.rel (%p316) target = $region24
        $region23: #{tpu_custom_call.1} parent=11 // pred_region
          _
        $region24: #{tpu_custom_call.1} parent=11 // pred_fallthru
          _
        // Predicated region
        $region25: #{tpu_custom_call.1} parent=11 // pred_check
          %p319 = pneg %p204
        $region26: #{tpu_custom_call.1} parent=11 // pred_check_branch
          %321 = sbr.rel (%p319) target = $region28
        $region27: #{tpu_custom_call.1} parent=11 // pred_region
          _
        $region28: #{tpu_custom_call.1} parent=11 // pred_fallthru
          _
        // Predicated region
        $region29: #{tpu_custom_call.1} parent=11 // pred_check
          %p322 = pneg %p225
        $region30: #{tpu_custom_call.1} parent=11 // pred_check_branch
          %324 = sbr.rel (%p322) target = $region32
        $region31: #{tpu_custom_call.1} parent=11 // pred_region
          _
        $region32: #{tpu_custom_call.1} parent=11 // pred_fallthru
          _
        // Predicated region
        $region33: #{tpu_custom_call.1} parent=11 // pred_check
          %p325 = pneg %p246
        $region34: #{tpu_custom_call.1} parent=11 // pred_check_branch
          %327 = sbr.rel (%p325) target = $region36
        $region35: #{tpu_custom_call.1} parent=11 // pred_region
          _
        $region36: #{tpu_custom_call.1} parent=11 // pred_fallthru
          _
        // Predicated region
        $region37: #{tpu_custom_call.1} parent=11 // pred_check
          %p328 = pneg %p267
        $region38: #{tpu_custom_call.1} parent=11 // pred_check_branch
          %330 = sbr.rel (%p328) target = $region40
        $region39: #{tpu_custom_call.1} parent=11 // pred_region
          _
        $region40: #{tpu_custom_call.1} parent=11 // pred_fallthru
          _
      $region12: #{tpu_custom_call.1} parent=5 // pred_fallthru
        _
      %p331 = scmp.lt.s32.totalorder %s19, 8
      // Predicated region
      $region41: #{tpu_custom_call.1} parent=5 // pred_check
        %p332 = pneg %p331
      $region42: #{tpu_custom_call.1} parent=5 // pred_check_branch
        %334 = sbr.rel (%p332) target = $region44
      $region43: #{tpu_custom_call.1} parent=5 // pred_region
        // Predicated region
        $region45: #{tpu_custom_call.1} parent=43 // pred_check
          %p335 = pneg %p60
        $region46: #{tpu_custom_call.1} parent=43 // pred_check_branch
          %337 = sbr.rel (%p335) target = $region48
        $region47: #{tpu_custom_call.1} parent=43 // pred_region
          %s338 = smul.u32 16, %s26
          %p339 = scmp.lt.s32.totalorder %s27, 1
          %s340 = scalar_select %p339, %s27, 1
          %p341 = scmp.lt.s32.totalorder %s338, 31
          %s342 = scalar_select %p341, %s338, 31
          %s343 = smul.addr %s340, 32
          %s344 = sadd.s32 %s342, %s343
          %s345 = smul.addr %s344, 8
          %s346 = scalar_lea.vmem %s0, %s345
          %s347 = smul.u32 16, %s26
        $region48: #{tpu_custom_call.1} parent=43 // pred_fallthru
          _
        // Predicated region
        $region49: #{tpu_custom_call.1} parent=43 // pred_check
          %p348 = pneg %p86
        $region50: #{tpu_custom_call.1} parent=43 // pred_check_branch
          %350 = sbr.rel (%p348) target = $region52
        $region51: #{tpu_custom_call.1} parent=43 // pred_region
          %s351 = smul.u32 2, %s28
          %p352 = scmp.lt.s32.totalorder %s351, 3
          %s353 = scalar_select %p352, %s351, 3
          %s354 = scalar_lea.vmem %s1, %s353
          %s355 = smul.u32 2, %s28
        $region52: #{tpu_custom_call.1} parent=43 // pred_fallthru
          _
        // Predicated region
        $region53: #{tpu_custom_call.1} parent=43 // pred_check
          %p356 = pneg %p114
        $region54: #{tpu_custom_call.1} parent=43 // pred_check_branch
          %358 = sbr.rel (%p356) target = $region56
        $region55: #{tpu_custom_call.1} parent=43 // pred_region
          %s359 = smul.u32 32, %s28
          %p360 = scmp.lt.s32.totalorder %s27, 1
          %s361 = scalar_select %p360, %s27, 1
          %p362 = scmp.lt.s32.totalorder %s359, 63
          %s363 = scalar_select %p362, %s359, 63
          %s364 = smul.addr %s361, 64
          %s365 = sadd.s32 %s363, %s364
          %s366 = smul.addr %s365, 4
          %s367 = scalar_lea.vmem %s2, %s366
          %s368 = smul.u32 32, %s28
        $region56: #{tpu_custom_call.1} parent=43 // pred_fallthru
          _
      $region44: #{tpu_custom_call.1} parent=5 // pred_fallthru
        _
      %p369 = scmp.le.s32.totalorder 1, %s19
      %p370 = scmp.lt.s32.totalorder %s19, 9
      %p371 = pnand %p369, %p370
      %p372 = pneg %p371
      // Predicated region
      $region57: #{tpu_custom_call.1} parent=5 // pred_check
        _
      $region58: #{tpu_custom_call.1} parent=5 // pred_check_branch
        %374 = sbr.rel (%p371) target = $region60
      $region59: #{tpu_custom_call.1} parent=5 // pred_region
        %s375 = ssub.s32 %s19, 1
        %s376 = smul.u32 16, %s29
        %p377 = scmp.lt.s32.totalorder %s30, 1
        %s378 = scalar_select %p377, %s30, 1
        %p379 = scmp.lt.s32.totalorder %s376, 31
        %s380 = scalar_select %p379, %s376, 31
        %s381 = smul.addr %s378, 32
        %s382 = sadd.s32 %s380, %s381
        %s383 = smul.addr %s382, 8
        %s384 = scalar_lea.vmem %s0, %s383
        %p385 = pneg %p66
        %p386 = pneg %p63
        %s387 = smul.u32 2, %s31
        %p388 = scmp.lt.s32.totalorder %s387, 3
        %s389 = scalar_select %p388, %s387, 3
        %s390 = scalar_lea.vmem %s1, %s389
        %p391 = pneg %p92
        %p392 = pneg %p89
        %s393 = smul.u32 32, %s31
        %p394 = scmp.lt.s32.totalorder %s30, 1
        %s395 = scalar_select %p394, %s30, 1
        %p396 = scmp.lt.s32.totalorder %s393, 63
        %s397 = scalar_select %p396, %s393, 63
        %s398 = smul.addr %s395, 64
        %s399 = sadd.s32 %s397, %s398
        %s400 = smul.addr %s399, 4
        %s401 = scalar_lea.vmem %s2, %s400
        %p402 = pneg %p120
        %p403 = pneg %p117
        %p404 = pneg %p141
        %p405 = pneg %p138
        %p406 = pneg %p162
        %p407 = pneg %p159
        %p408 = pneg %p183
        %p409 = pneg %p180
        %p410 = pneg %p204
        %p411 = pneg %p201
        %p412 = pneg %p225
        %p413 = pneg %p222
        %p414 = pneg %p246
        %p415 = pneg %p243
        %p416 = pneg %p267
        %p417 = pneg %p264
        %p418 = pneg %p295
        %p419 = pneg %p292
        %s420 = sand.u32 %s282, 1
        %s421 = scalar_lea.sflag [#allocation4], %s420
        %s422 = sand.u32 %s282, 1
        %s423 = smul.addr %s422, 128
        %s424 = scalar_lea.vmem [#allocation3], %s423
        %s425 = smul.u32 16, %s29
        %p426 = scmp.lt.s32.totalorder %s30, 1
        %s427 = scalar_select %p426, %s30, 1
        %p428 = scmp.lt.s32.totalorder %s425, 31
        %s429 = scalar_select %p428, %s425, 31
        %s430 = smul.addr %s427, 32
        %s431 = sadd.s32 %s429, %s430
        %s432 = smul.addr %s431, 8
        %s433 = scalar_lea.vmem %s0, %s432
        %s434 = smul.u32 16, %s29
        %s435 = smul.u32 2, %s31
        %p436 = scmp.lt.s32.totalorder %s435, 3
        %s437 = scalar_select %p436, %s435, 3
        %s438 = scalar_lea.vmem %s1, %s437
        %s439 = smul.u32 2, %s31
        %s440 = smul.u32 32, %s31
        %p441 = scmp.lt.s32.totalorder %s30, 1
        %s442 = scalar_select %p441, %s30, 1
        %p443 = scmp.lt.s32.totalorder %s440, 63
        %s444 = scalar_select %p443, %s440, 63
        %s445 = smul.addr %s442, 64
        %s446 = sadd.s32 %s444, %s445
        %s447 = smul.addr %s446, 4
        %s448 = scalar_lea.vmem %s2, %s447
        %s449 = smul.u32 32, %s31
        %s450 = smul.u32 16, %s29
        %p452 = scmp.eq.s32.totalorder %s31, 0
        // Predicated region
        $region61: #{tpu_custom_call.1} parent=59 // pred_check
          %p453 = pneg %p452
        $region62: #{tpu_custom_call.1} parent=59 // pred_check_branch
          %455 = sbr.rel (%p453) target = $region64
        $region63: #{tpu_custom_call.1} parent=59 // pred_region
          %vm456 = vcmask 130048
          %457 = vst.msk [vmem:[#allocation2] sm:$0xff] %vm456, 0.0
          %458 = vst.msk [vmem:[#allocation2 + $0x8] sm:$0xff] %vm456, 0.0
          %459 = vst.msk [vmem:[#allocation2 + $0x10] sm:$0xff] %vm456, 0.0
          %460 = vst.msk [vmem:[#allocation2 + $0x18] sm:$0xff] %vm456, 0.0
          %461 = vst.msk [vmem:[#allocation2 + $0x20] sm:$0xff] %vm456, 0.0
          %462 = vst.msk [vmem:[#allocation2 + $0x28] sm:$0xff] %vm456, 0.0
          %463 = vst.msk [vmem:[#allocation2 + $0x30] sm:$0xff] %vm456, 0.0
          %464 = vst.msk [vmem:[#allocation2 + $0x38] sm:$0xff] %vm456, 0.0
          %465 = vst.msk [vmem:[#allocation2 + $0x40] sm:$0xff] %vm456, 0.0
          %466 = vst.msk [vmem:[#allocation2 + $0x48] sm:$0xff] %vm456, 0.0
          %467 = vst.msk [vmem:[#allocation2 + $0x50] sm:$0xff] %vm456, 0.0
          %468 = vst.msk [vmem:[#allocation2 + $0x58] sm:$0xff] %vm456, 0.0
          %469 = vst.msk [vmem:[#allocation2 + $0x60] sm:$0xff] %vm456, 0.0
          %470 = vst.msk [vmem:[#allocation2 + $0x68] sm:$0xff] %vm456, 0.0
          %471 = vst.msk [vmem:[#allocation2 + $0x70] sm:$0xff] %vm456, 0.0
          %472 = vst.msk [vmem:[#allocation2 + $0x78] sm:$0xff] %vm456, 0.0
        $region64: #{tpu_custom_call.1} parent=59 // pred_fallthru
          _
        %v473 = vlaneseq
        %v474 = vshrl.u32 %v473, 7
        %v475 = vadd.s32 %v474, 8
        %v476 = vadd.s32 %v474, 16
        %v477 = vadd.s32 %v474, 24
        %v478 = vadd.s32 %v474, 32
        %v479 = vadd.s32 %v474, 40
        %v480 = vadd.s32 %v474, 48
        %v481 = vadd.s32 %v474, 56
        %v482 = vadd.s32 %v474, 64
        %v483 = vadd.s32 %v474, 72
        %v484 = vadd.s32 %v474, 80
        %v485 = vadd.s32 %v474, 88
        %v486 = vadd.s32 %v474, 96
        %v487 = vadd.s32 %v474, 104
        %v488 = vadd.s32 %v474, 112
        %v489 = vadd.s32 %v474, 120
        %s490 = smul.u32 %s29, 128
        %v491 = vstv %s490
        %v492 = vadd.s32 %v474, %v491
        %v493 = vadd.s32 %v475, %v491
        %v494 = vadd.s32 %v476, %v491
        %v495 = vadd.s32 %v477, %v491
        %v496 = vadd.s32 %v478, %v491
        %v497 = vadd.s32 %v479, %v491
        %v498 = vadd.s32 %v480, %v491
        %v499 = vadd.s32 %v481, %v491
        %v500 = vadd.s32 %v482, %v491
        %v501 = vadd.s32 %v483, %v491
        %v502 = vadd.s32 %v484, %v491
        %v503 = vadd.s32 %v485, %v491
        %v504 = vadd.s32 %v486, %v491
        %v505 = vadd.s32 %v487, %v491
        %v506 = vadd.s32 %v488, %v491
        %v507 = vadd.s32 %v489, %v491
        %v508 = vld [vmem:[%s438] sm:$0x3]
        %v509 = vperm.slane %v508, 0
        %v510 = vperm.slane %v508, 1
        %vm511 = vcmp.eq.s32.totalorder %v492, %v509
        %vm512 = vcmp.eq.s32.totalorder %v492, %v510
        %vm513 = vcmp.eq.s32.totalorder %v493, %v509
        %vm514 = vcmp.eq.s32.totalorder %v493, %v510
        %vm515 = vcmp.eq.s32.totalorder %v494, %v509
        %vm516 = vcmp.eq.s32.totalorder %v494, %v510
        %vm517 = vcmp.eq.s32.totalorder %v495, %v509
        %vm518 = vcmp.eq.s32.totalorder %v495, %v510
        %vm519 = vcmp.eq.s32.totalorder %v496, %v509
        %vm520 = vcmp.eq.s32.totalorder %v496, %v510
        %vm521 = vcmp.eq.s32.totalorder %v497, %v509
        %vm522 = vcmp.eq.s32.totalorder %v497, %v510
        %vm523 = vcmp.eq.s32.totalorder %v498, %v509
        %vm524 = vcmp.eq.s32.totalorder %v498, %v510
        %vm525 = vcmp.eq.s32.totalorder %v499, %v509
        %vm526 = vcmp.eq.s32.totalorder %v499, %v510
        %vm527 = vcmp.eq.s32.totalorder %v500, %v509
        %vm528 = vcmp.eq.s32.totalorder %v500, %v510
        %vm529 = vcmp.eq.s32.totalorder %v501, %v509
        %vm530 = vcmp.eq.s32.totalorder %v501, %v510
        %vm531 = vcmp.eq.s32.totalorder %v502, %v509
        %vm532 = vcmp.eq.s32.totalorder %v502, %v510
        %vm533 = vcmp.eq.s32.totalorder %v503, %v509
        %vm534 = vcmp.eq.s32.totalorder %v503, %v510
        %vm535 = vcmp.eq.s32.totalorder %v504, %v509
        %vm536 = vcmp.eq.s32.totalorder %v504, %v510
        %vm537 = vcmp.eq.s32.totalorder %v505, %v509
        %vm538 = vcmp.eq.s32.totalorder %v505, %v510
        %vm539 = vcmp.eq.s32.totalorder %v506, %v509
        %vm540 = vcmp.eq.s32.totalorder %v506, %v510
        %vm541 = vcmp.eq.s32.totalorder %v507, %v509
        %vm542 = vcmp.eq.s32.totalorder %v507, %v510
        %v543 = vsel %vm511, 1, 0
        %v544 = vsel %vm512, 1, 0
        %v545 = vsel %vm513, 1, 0
        %v546 = vsel %vm514, 1, 0
        %v547 = vsel %vm515, 1, 0
        %v548 = vsel %vm516, 1, 0
        %v549 = vsel %vm517, 1, 0
        %v550 = vsel %vm518, 1, 0
        %v551 = vsel %vm519, 1, 0
        %v552 = vsel %vm520, 1, 0
        %v553 = vsel %vm521, 1, 0
        %v554 = vsel %vm522, 1, 0
        %v555 = vsel %vm523, 1, 0
        %v556 = vsel %vm524, 1, 0
        %v557 = vsel %vm525, 1, 0
        %v558 = vsel %vm526, 1, 0
        %v559 = vsel %vm527, 1, 0
        %v560 = vsel %vm528, 1, 0
        %v561 = vsel %vm529, 1, 0
        %v562 = vsel %vm530, 1, 0
        %v563 = vsel %vm531, 1, 0
        %v564 = vsel %vm532, 1, 0
        %v565 = vsel %vm533, 1, 0
        %v566 = vsel %vm534, 1, 0
        %v567 = vsel %vm535, 1, 0
        %v568 = vsel %vm536, 1, 0
        %v569 = vsel %vm537, 1, 0
        %v570 = vsel %vm538, 1, 0
        %v571 = vsel %vm539, 1, 0
        %v572 = vsel %vm540, 1, 0
        %v573 = vsel %vm541, 1, 0
        %v574 = vsel %vm542, 1, 0
        %v575 = vcvt.s32.f32 %v543
        %v576 = vcvt.s32.f32 %v544
        %v577 = vcvt.s32.f32 %v545
        %v578 = vcvt.s32.f32 %v546
        %v579 = vcvt.s32.f32 %v547
        %v580 = vcvt.s32.f32 %v548
        %v581 = vcvt.s32.f32 %v549
        %v582 = vcvt.s32.f32 %v550
        %v583 = vcvt.s32.f32 %v551
        %v584 = vcvt.s32.f32 %v552
        %v585 = vcvt.s32.f32 %v553
        %v586 = vcvt.s32.f32 %v554
        %v587 = vcvt.s32.f32 %v555
        %v588 = vcvt.s32.f32 %v556
        %v589 = vcvt.s32.f32 %v557
        %v590 = vcvt.s32.f32 %v558
        %v591 = vcvt.s32.f32 %v559
        %v592 = vcvt.s32.f32 %v560
        %v593 = vcvt.s32.f32 %v561
        %v594 = vcvt.s32.f32 %v562
        %v595 = vcvt.s32.f32 %v563
        %v596 = vcvt.s32.f32 %v564
        %v597 = vcvt.s32.f32 %v565
        %v598 = vcvt.s32.f32 %v566
        %v599 = vcvt.s32.f32 %v567
        %v600 = vcvt.s32.f32 %v568
        %v601 = vcvt.s32.f32 %v569
        %v602 = vcvt.s32.f32 %v570
        %v603 = vcvt.s32.f32 %v571
        %v604 = vcvt.s32.f32 %v572
        %v605 = vcvt.s32.f32 %v573
        %v606 = vcvt.s32.f32 %v574
        %v607 = vpack.c.bf16 %v577, %v575
        %v608 = vpack.c.bf16 %v578, %v576
        %v609 = vpack.c.bf16 %v581, %v579
        %v610 = vpack.c.bf16 %v582, %v580
        %v611 = vpack.c.bf16 %v585, %v583
        %v612 = vpack.c.bf16 %v586, %v584
        %v613 = vpack.c.bf16 %v589, %v587
        %v614 = vpack.c.bf16 %v590, %v588
        %v615 = vpack.c.bf16 %v593, %v591
        %v616 = vpack.c.bf16 %v594, %v592
        %v617 = vpack.c.bf16 %v597, %v595
        %v618 = vpack.c.bf16 %v598, %v596
        %v619 = vpack.c.bf16 %v601, %v599
        %v620 = vpack.c.bf16 %v602, %v600
        %v621 = vpack.c.bf16 %v605, %v603
        %v622 = vpack.c.bf16 %v606, %v604
        %v623 = vld [vmem:[#allocation2] sm:$0xff]
        %v624 = vld [vmem:[#allocation2 + $0x8] sm:$0xff]
        %v625 = vld [vmem:[#allocation2 + $0x10] sm:$0xff]
        %v626 = vld [vmem:[#allocation2 + $0x18] sm:$0xff]
        %v627 = vld [vmem:[#allocation2 + $0x20] sm:$0xff]
        %v628 = vld [vmem:[#allocation2 + $0x28] sm:$0xff]
        %v629 = vld [vmem:[#allocation2 + $0x30] sm:$0xff]
        %v630 = vld [vmem:[#allocation2 + $0x38] sm:$0xff]
        %v631 = vld [vmem:[#allocation2 + $0x40] sm:$0xff]
        %v632 = vld [vmem:[#allocation2 + $0x48] sm:$0xff]
        %v633 = vld [vmem:[#allocation2 + $0x50] sm:$0xff]
        %v634 = vld [vmem:[#allocation2 + $0x58] sm:$0xff]
        %v635 = vld [vmem:[#allocation2 + $0x60] sm:$0xff]
        %v636 = vld [vmem:[#allocation2 + $0x68] sm:$0xff]
        %v637 = vld [vmem:[#allocation2 + $0x70] sm:$0xff]
        %v638 = vld [vmem:[#allocation2 + $0x78] sm:$0xff]
        %v639 = vld [vmem:[%s448] sm:$0xf]
        %v640 = vld [vmem:[%s448 + $0x4] sm:$0xf]
        %v641 = vld [vmem:[%s448 + $0x8] sm:$0xf]
        %v642 = vld [vmem:[%s448 + $0xc] sm:$0xf]
        %v643 = vld [vmem:[%s448 + $0x10] sm:$0xf]
        %v644 = vld [vmem:[%s448 + $0x14] sm:$0xf]
        %v645 = vld [vmem:[%s448 + $0x18] sm:$0xf]
        %v646 = vld [vmem:[%s448 + $0x1c] sm:$0xf]
        %v647 = vld [vmem:[%s448 + $0x20] sm:$0xf]
        %v648 = vld [vmem:[%s448 + $0x24] sm:$0xf]
        %v649 = vld [vmem:[%s448 + $0x28] sm:$0xf]
        %v650 = vld [vmem:[%s448 + $0x2c] sm:$0xf]
        %v651 = vld [vmem:[%s448 + $0x30] sm:$0xf]
        %v652 = vld [vmem:[%s448 + $0x34] sm:$0xf]
        %v653 = vld [vmem:[%s448 + $0x38] sm:$0xf]
        %v654 = vld [vmem:[%s448 + $0x3c] sm:$0xf]
        %v655 = vld [vmem:[%s448 + $0x40] sm:$0xf]
        %v656 = vld [vmem:[%s448 + $0x44] sm:$0xf]
        %v657 = vld [vmem:[%s448 + $0x48] sm:$0xf]
        %v658 = vld [vmem:[%s448 + $0x4c] sm:$0xf]
        %v659 = vld [vmem:[%s448 + $0x50] sm:$0xf]
        %v660 = vld [vmem:[%s448 + $0x54] sm:$0xf]
        %v661 = vld [vmem:[%s448 + $0x58] sm:$0xf]
        %v662 = vld [vmem:[%s448 + $0x5c] sm:$0xf]
        %v663 = vld [vmem:[%s448 + $0x60] sm:$0xf]
        %v664 = vld [vmem:[%s448 + $0x64] sm:$0xf]
        %v665 = vld [vmem:[%s448 + $0x68] sm:$0xf]
        %v666 = vld [vmem:[%s448 + $0x6c] sm:$0xf]
        %v667 = vld [vmem:[%s448 + $0x70] sm:$0xf]
        %v668 = vld [vmem:[%s448 + $0x74] sm:$0xf]
        %v669 = vld [vmem:[%s448 + $0x78] sm:$0xf]
        %v670 = vld [vmem:[%s448 + $0x7c] sm:$0xf]
        %v703 = vunpack.c.l.b16 %v639
        %v704 = vunpack.c.l.b16 %v640
        %v705 = vunpack.c.l.b16 %v641
        %v706 = vunpack.c.l.b16 %v642
        %v707 = vunpack.c.l.b16 %v643
        %v708 = vunpack.c.l.b16 %v644
        %v709 = vunpack.c.l.b16 %v645
        %v710 = vunpack.c.l.b16 %v646
        %v711 = vunpack.c.l.b16 %v647
        %v712 = vunpack.c.l.b16 %v648
        %v713 = vunpack.c.l.b16 %v649
        %v714 = vunpack.c.l.b16 %v650
        %v715 = vunpack.c.l.b16 %v651
        %v716 = vunpack.c.l.b16 %v652
        %v717 = vunpack.c.l.b16 %v653
        %v718 = vunpack.c.l.b16 %v654
        %v719 = vunpack.c.l.b16 %v655
        %v720 = vunpack.c.l.b16 %v656
        %v721 = vunpack.c.l.b16 %v657
        %v722 = vunpack.c.l.b16 %v658
        %v723 = vunpack.c.l.b16 %v659
        %v724 = vunpack.c.l.b16 %v660
        %v725 = vunpack.c.l.b16 %v661
        %v726 = vunpack.c.l.b16 %v662
        %v727 = vunpack.c.l.b16 %v663
        %v728 = vunpack.c.l.b16 %v664
        %v729 = vunpack.c.l.b16 %v665
        %v730 = vunpack.c.l.b16 %v666
        %v731 = vunpack.c.l.b16 %v667
        %v732 = vunpack.c.l.b16 %v668
        %v733 = vunpack.c.l.b16 %v669
        %v734 = vunpack.c.l.b16 %v670
        %v735 = vpack.c.b16 %v704, %v703
        %v736 = vpack.c.b16 %v706, %v705
        %v737 = vpack.c.b16 %v708, %v707
        %v738 = vpack.c.b16 %v710, %v709
        %v739 = vpack.c.b16 %v712, %v711
        %v740 = vpack.c.b16 %v714, %v713
        %v741 = vpack.c.b16 %v716, %v715
        %v742 = vpack.c.b16 %v718, %v717
        %v743 = vpack.c.b16 %v720, %v719
        %v744 = vpack.c.b16 %v722, %v721
        %v745 = vpack.c.b16 %v724, %v723
        %v746 = vpack.c.b16 %v726, %v725
        %v747 = vpack.c.b16 %v728, %v727
        %v748 = vpack.c.b16 %v730, %v729
        %v749 = vpack.c.b16 %v732, %v731
        %v750 = vpack.c.b16 %v734, %v733
        %767 = vmatpush.bf16.msra.mxu0 %v742
        %768 = vmatpush.bf16.msra.mxu0 %v741
        %769 = vmatpush.bf16.msra.mxu0 %v740
        %770 = vmatpush.bf16.msra.mxu0 %v739
        %771 = vmatpush.bf16.msra.mxu0 %v738
        %772 = vmatpush.bf16.msra.mxu0 %v737
        %773 = vmatpush.bf16.msra.mxu0 %v736
        %774 = vmatpush.bf16.msra.mxu0 %v735
        %775 = vmatmul.bf16.gmra.mxu0 %v607
        %v776 = vpop.f32.mrf.mxu0
        %v777 = vadd.f32 0.0, %v776
        %v778 = vpop.f32.mrf.mxu0
        %v779 = vadd.f32 0.0, %v778
        %780 = vmatmul.bf16.gmra.mxu0 %v609
        %v781 = vpop.f32.mrf.mxu0
        %v782 = vadd.f32 0.0, %v781
        %v783 = vpop.f32.mrf.mxu0
        %v784 = vadd.f32 0.0, %v783
        %785 = vmatmul.bf16.gmra.mxu0 %v611
        %v786 = vpop.f32.mrf.mxu0
        %v787 = vadd.f32 0.0, %v786
        %v788 = vpop.f32.mrf.mxu0
        %v789 = vadd.f32 0.0, %v788
        %790 = vmatmul.bf16.gmra.mxu0 %v613
        %v791 = vpop.f32.mrf.mxu0
        %v792 = vadd.f32 0.0, %v791
        %v793 = vpop.f32.mrf.mxu0
        %v794 = vadd.f32 0.0, %v793
        %795 = vmatmul.bf16.gmra.mxu0 %v615
        %v796 = vpop.f32.mrf.mxu0
        %v797 = vadd.f32 0.0, %v796
        %v798 = vpop.f32.mrf.mxu0
        %v799 = vadd.f32 0.0, %v798
        %800 = vmatmul.bf16.gmra.mxu0 %v617
        %v801 = vpop.f32.mrf.mxu0
        %v802 = vadd.f32 0.0, %v801
        %v803 = vpop.f32.mrf.mxu0
        %v804 = vadd.f32 0.0, %v803
        %805 = vmatmul.bf16.gmra.mxu0 %v619
        %v806 = vpop.f32.mrf.mxu0
        %v807 = vadd.f32 0.0, %v806
        %v808 = vpop.f32.mrf.mxu0
        %v809 = vadd.f32 0.0, %v808
        %810 = vmatmul.bf16.gmra.mxu0 %v621
        %v811 = vpop.f32.mrf.mxu0
        %v812 = vadd.f32 0.0, %v811
        %v813 = vpop.f32.mrf.mxu0
        %v814 = vadd.f32 0.0, %v813
        %815 = vdwg.mxu0
        %816 = vmatpush.bf16.msra.mxu0 %v750
        %817 = vmatpush.bf16.msra.mxu0 %v749
        %818 = vmatpush.bf16.msra.mxu0 %v748
        %819 = vmatpush.bf16.msra.mxu0 %v747
        %820 = vmatpush.bf16.msra.mxu0 %v746
        %821 = vmatpush.bf16.msra.mxu0 %v745
        %822 = vmatpush.bf16.msra.mxu0 %v744
        %823 = vmatpush.bf16.msra.mxu0 %v743
        %824 = vmatmul.bf16.gmra.mxu0 %v608
        %v825 = vpop.f32.mrf.mxu0
        %v826 = vadd.f32 %v777, %v825
        %v827 = vpop.f32.mrf.mxu0
        %v828 = vadd.f32 %v779, %v827
        %829 = vmatmul.bf16.gmra.mxu0 %v610
        %v830 = vpop.f32.mrf.mxu0
        %v831 = vadd.f32 %v782, %v830
        %v832 = vpop.f32.mrf.mxu0
        %v833 = vadd.f32 %v784, %v832
        %834 = vmatmul.bf16.gmra.mxu0 %v612
        %v835 = vpop.f32.mrf.mxu0
        %v836 = vadd.f32 %v787, %v835
        %v837 = vpop.f32.mrf.mxu0
        %v838 = vadd.f32 %v789, %v837
        %839 = vmatmul.bf16.gmra.mxu0 %v614
        %v840 = vpop.f32.mrf.mxu0
        %v841 = vadd.f32 %v792, %v840
        %v842 = vpop.f32.mrf.mxu0
        %v843 = vadd.f32 %v794, %v842
        %844 = vmatmul.bf16.gmra.mxu0 %v616
        %v845 = vpop.f32.mrf.mxu0
        %v846 = vadd.f32 %v797, %v845
        %v847 = vpop.f32.mrf.mxu0
        %v848 = vadd.f32 %v799, %v847
        %849 = vmatmul.bf16.gmra.mxu0 %v618
        %v850 = vpop.f32.mrf.mxu0
        %v851 = vadd.f32 %v802, %v850
        %v852 = vpop.f32.mrf.mxu0
        %v853 = vadd.f32 %v804, %v852
        %854 = vmatmul.bf16.gmra.mxu0 %v620
        %v855 = vpop.f32.mrf.mxu0
        %v856 = vadd.f32 %v807, %v855
        %v857 = vpop.f32.mrf.mxu0
        %v858 = vadd.f32 %v809, %v857
        %859 = vmatmul.bf16.gmra.mxu0 %v622
        %v860 = vpop.f32.mrf.mxu0
        %v861 = vadd.f32 %v812, %v860
        %v862 = vpop.f32.mrf.mxu0
        %v863 = vadd.f32 %v814, %v862
        %864 = vdwg.mxu0
        %v865 = vadd.f32 %v623, %v826
        %v866 = vadd.f32 %v624, %v828
        %v867 = vadd.f32 %v625, %v831
        %v868 = vadd.f32 %v626, %v833
        %v869 = vadd.f32 %v627, %v836
        %v870 = vadd.f32 %v628, %v838
        %v871 = vadd.f32 %v629, %v841
        %v872 = vadd.f32 %v630, %v843
        %v873 = vadd.f32 %v631, %v846
        %v874 = vadd.f32 %v632, %v848
        %v875 = vadd.f32 %v633, %v851
        %v876 = vadd.f32 %v634, %v853
        %v877 = vadd.f32 %v635, %v856
        %v878 = vadd.f32 %v636, %v858
        %v879 = vadd.f32 %v637, %v861
        %v880 = vadd.f32 %v638, %v863
        %vm881 = vcmask 130048
        %882 = vst.msk [vmem:[#allocation2] sm:$0xff] %vm881, %v865
        %883 = vst.msk [vmem:[#allocation2 + $0x8] sm:$0xff] %vm881, %v866
        %884 = vst.msk [vmem:[#allocation2 + $0x10] sm:$0xff] %vm881, %v867
        %885 = vst.msk [vmem:[#allocation2 + $0x18] sm:$0xff] %vm881, %v868
        %886 = vst.msk [vmem:[#allocation2 + $0x20] sm:$0xff] %vm881, %v869
        %887 = vst.msk [vmem:[#allocation2 + $0x28] sm:$0xff] %vm881, %v870
        %888 = vst.msk [vmem:[#allocation2 + $0x30] sm:$0xff] %vm881, %v871
        %889 = vst.msk [vmem:[#allocation2 + $0x38] sm:$0xff] %vm881, %v872
        %890 = vst.msk [vmem:[#allocation2 + $0x40] sm:$0xff] %vm881, %v873
        %891 = vst.msk [vmem:[#allocation2 + $0x48] sm:$0xff] %vm881, %v874
        %892 = vst.msk [vmem:[#allocation2 + $0x50] sm:$0xff] %vm881, %v875
        %893 = vst.msk [vmem:[#allocation2 + $0x58] sm:$0xff] %vm881, %v876
        %894 = vst.msk [vmem:[#allocation2 + $0x60] sm:$0xff] %vm881, %v877
        %895 = vst.msk [vmem:[#allocation2 + $0x68] sm:$0xff] %vm881, %v878
        %896 = vst.msk [vmem:[#allocation2 + $0x70] sm:$0xff] %vm881, %v879
        %897 = vst.msk [vmem:[#allocation2 + $0x78] sm:$0xff] %vm881, %v880
        %p898 = scmp.eq.s32.totalorder %s31, 1
        // Predicated region
        $region65: #{tpu_custom_call.1} parent=59 // pred_check
          %p899 = pneg %p898
        $region66: #{tpu_custom_call.1} parent=59 // pred_check_branch
          %901 = sbr.rel (%p899) target = $region68
        $region67: #{tpu_custom_call.1} parent=59 // pred_region
          %v902 = vld [vmem:[%s433] sm:$0xff]
          %v903 = vld [vmem:[%s433 + $0x8] sm:$0xff]
          %v904 = vld [vmem:[%s433 + $0x10] sm:$0xff]
          %v905 = vld [vmem:[%s433 + $0x18] sm:$0xff]
          %v906 = vld [vmem:[%s433 + $0x20] sm:$0xff]
          %v907 = vld [vmem:[%s433 + $0x28] sm:$0xff]
          %v908 = vld [vmem:[%s433 + $0x30] sm:$0xff]
          %v909 = vld [vmem:[%s433 + $0x38] sm:$0xff]
          %v910 = vld [vmem:[%s433 + $0x40] sm:$0xff]
          %v911 = vld [vmem:[%s433 + $0x48] sm:$0xff]
          %v912 = vld [vmem:[%s433 + $0x50] sm:$0xff]
          %v913 = vld [vmem:[%s433 + $0x58] sm:$0xff]
          %v914 = vld [vmem:[%s433 + $0x60] sm:$0xff]
          %v915 = vld [vmem:[%s433 + $0x68] sm:$0xff]
          %v916 = vld [vmem:[%s433 + $0x70] sm:$0xff]
          %v917 = vld [vmem:[%s433 + $0x78] sm:$0xff]
          %v918 = vpack.c.bf16 %v903, %v902
          %v919 = vpack.c.bf16 %v905, %v904
          %v920 = vpack.c.bf16 %v907, %v906
          %v921 = vpack.c.bf16 %v909, %v908
          %v922 = vpack.c.bf16 %v911, %v910
          %v923 = vpack.c.bf16 %v913, %v912
          %v924 = vpack.c.bf16 %v915, %v914
          %v925 = vpack.c.bf16 %v917, %v916
          %v926 = vld [vmem:[#allocation2] sm:$0xff]
          %v927 = vld [vmem:[#allocation2 + $0x8] sm:$0xff]
          %v928 = vld [vmem:[#allocation2 + $0x10] sm:$0xff]
          %v929 = vld [vmem:[#allocation2 + $0x18] sm:$0xff]
          %v930 = vld [vmem:[#allocation2 + $0x20] sm:$0xff]
          %v931 = vld [vmem:[#allocation2 + $0x28] sm:$0xff]
          %v932 = vld [vmem:[#allocation2 + $0x30] sm:$0xff]
          %v933 = vld [vmem:[#allocation2 + $0x38] sm:$0xff]
          %v934 = vld [vmem:[#allocation2 + $0x40] sm:$0xff]
          %v935 = vld [vmem:[#allocation2 + $0x48] sm:$0xff]
          %v936 = vld [vmem:[#allocation2 + $0x50] sm:$0xff]
          %v937 = vld [vmem:[#allocation2 + $0x58] sm:$0xff]
          %v938 = vld [vmem:[#allocation2 + $0x60] sm:$0xff]
          %v939 = vld [vmem:[#allocation2 + $0x68] sm:$0xff]
          %v940 = vld [vmem:[#allocation2 + $0x70] sm:$0xff]
          %v941 = vld [vmem:[#allocation2 + $0x78] sm:$0xff]
          %v942 = vpack.c.bf16 %v927, %v926
          %v943 = vpack.c.bf16 %v929, %v928
          %v944 = vpack.c.bf16 %v931, %v930
          %v945 = vpack.c.bf16 %v933, %v932
          %v946 = vpack.c.bf16 %v935, %v934
          %v947 = vpack.c.bf16 %v937, %v936
          %v948 = vpack.c.bf16 %v939, %v938
          %v949 = vpack.c.bf16 %v941, %v940
          %v950 = vld [vmem:[%s3] sm:$0xf]
          %v951 = vld [vmem:[%s3 + $0x4] sm:$0xf]
          %v952 = vld [vmem:[%s4] sm:$0xf]
          %v953 = vld [vmem:[%s4 + $0x4] sm:$0xf]
          %v956 = vunpack.c.l.b16 %v952
          %v957 = vunpack.c.l.b16 %v953
          %v958 = vpack.c.b16 %v957, %v956
          %v961 = vsel %vm881, %v942, 0
          %v964 = vsel %vm881, %v943, 0
          %v967 = vsel %vm881, %v944, 0
          %v970 = vsel %vm881, %v945, 0
          %v973 = vsel %vm881, %v946, 0
          %v976 = vsel %vm881, %v947, 0
          %v979 = vsel %vm881, %v948, 0
          %v982 = vsel %vm881, %v949, 0
          %984 = vmatpush.bf16.msra.mxu0 0
          %985 = vmatpush.bf16.msra.mxu0 0
          %986 = vmatpush.bf16.msra.mxu0 0
          %987 = vmatpush.bf16.msra.mxu0 0
          %988 = vmatpush.bf16.msra.mxu0 0
          %989 = vmatpush.bf16.msra.mxu0 0
          %990 = vmatpush.bf16.msra.mxu0 0
          %991 = vmatpush.bf16.msra.mxu0 %v958
          %992 = vmatmul.bf16.gmra.mxu0 %v961
          %v993 = vpop.f32.mrf.mxu0
          %v994 = vadd.f32 0.0, %v993
          %v995 = vpop.f32.mrf.mxu0
          %v996 = vadd.f32 0.0, %v995
          %997 = vmatmul.bf16.gmra.mxu0 %v964
          %v998 = vpop.f32.mrf.mxu0
          %v999 = vadd.f32 0.0, %v998
          %v1000 = vpop.f32.mrf.mxu0
          %v1001 = vadd.f32 0.0, %v1000
          %1002 = vmatmul.bf16.gmra.mxu0 %v967
          %v1003 = vpop.f32.mrf.mxu0
          %v1004 = vadd.f32 0.0, %v1003
          %v1005 = vpop.f32.mrf.mxu0
          %v1006 = vadd.f32 0.0, %v1005
          %1007 = vmatmul.bf16.gmra.mxu0 %v970
          %v1008 = vpop.f32.mrf.mxu0
          %v1009 = vadd.f32 0.0, %v1008
          %v1010 = vpop.f32.mrf.mxu0
          %v1011 = vadd.f32 0.0, %v1010
          %1012 = vmatmul.bf16.gmra.mxu0 %v973
          %v1013 = vpop.f32.mrf.mxu0
          %v1014 = vadd.f32 0.0, %v1013
          %v1015 = vpop.f32.mrf.mxu0
          %v1016 = vadd.f32 0.0, %v1015
          %1017 = vmatmul.bf16.gmra.mxu0 %v976
          %v1018 = vpop.f32.mrf.mxu0
          %v1019 = vadd.f32 0.0, %v1018
          %v1020 = vpop.f32.mrf.mxu0
          %v1021 = vadd.f32 0.0, %v1020
          %1022 = vmatmul.bf16.gmra.mxu0 %v979
          %v1023 = vpop.f32.mrf.mxu0
          %v1024 = vadd.f32 0.0, %v1023
          %v1025 = vpop.f32.mrf.mxu0
          %v1026 = vadd.f32 0.0, %v1025
          %1027 = vmatmul.bf16.gmra.mxu0 %v982
          %v1028 = vpop.f32.mrf.mxu0
          %v1029 = vadd.f32 0.0, %v1028
          %v1030 = vpop.f32.mrf.mxu0
          %v1031 = vadd.f32 0.0, %v1030
          %1032 = vdwg.mxu0
          %v1035 = vunpack.c.l.b16 %v950
          %v1036 = vunpack.c.l.b16 %v951
          %v1037 = vpack.c.b16 %v1036, %v1035
          %v1040 = vsel %vm881, %v918, 0
          %v1043 = vsel %vm881, %v919, 0
          %v1046 = vsel %vm881, %v920, 0
          %v1049 = vsel %vm881, %v921, 0
          %v1052 = vsel %vm881, %v922, 0
          %v1055 = vsel %vm881, %v923, 0
          %v1058 = vsel %vm881, %v924, 0
          %v1061 = vsel %vm881, %v925, 0
          %1063 = vmatpush.bf16.msra.mxu0 0
          %1064 = vmatpush.bf16.msra.mxu0 0
          %1065 = vmatpush.bf16.msra.mxu0 0
          %1066 = vmatpush.bf16.msra.mxu0 0
          %1067 = vmatpush.bf16.msra.mxu0 0
          %1068 = vmatpush.bf16.msra.mxu0 0
          %1069 = vmatpush.bf16.msra.mxu0 0
          %1070 = vmatpush.bf16.msra.mxu0 %v1037
          %1071 = vmatmul.bf16.gmra.mxu0 %v1040
          %v1072 = vpop.f32.mrf.mxu0
          %v1073 = vadd.f32 %v994, %v1072
          %v1074 = vpop.f32.mrf.mxu0
          %v1075 = vadd.f32 %v996, %v1074
          %1076 = vmatmul.bf16.gmra.mxu0 %v1043
          %v1077 = vpop.f32.mrf.mxu0
          %v1078 = vadd.f32 %v999, %v1077
          %v1079 = vpop.f32.mrf.mxu0
          %v1080 = vadd.f32 %v1001, %v1079
          %1081 = vmatmul.bf16.gmra.mxu0 %v1046
          %v1082 = vpop.f32.mrf.mxu0
          %v1083 = vadd.f32 %v1004, %v1082
          %v1084 = vpop.f32.mrf.mxu0
          %v1085 = vadd.f32 %v1006, %v1084
          %1086 = vmatmul.bf16.gmra.mxu0 %v1049
          %v1087 = vpop.f32.mrf.mxu0
          %v1088 = vadd.f32 %v1009, %v1087
          %v1089 = vpop.f32.mrf.mxu0
          %v1090 = vadd.f32 %v1011, %v1089
          %1091 = vmatmul.bf16.gmra.mxu0 %v1052
          %v1092 = vpop.f32.mrf.mxu0
          %v1093 = vadd.f32 %v1014, %v1092
          %v1094 = vpop.f32.mrf.mxu0
          %v1095 = vadd.f32 %v1016, %v1094
          %1096 = vmatmul.bf16.gmra.mxu0 %v1055
          %v1097 = vpop.f32.mrf.mxu0
          %v1098 = vadd.f32 %v1019, %v1097
          %v1099 = vpop.f32.mrf.mxu0
          %v1100 = vadd.f32 %v1021, %v1099
          %1101 = vmatmul.bf16.gmra.mxu0 %v1058
          %v1102 = vpop.f32.mrf.mxu0
          %v1103 = vadd.f32 %v1024, %v1102
          %v1104 = vpop.f32.mrf.mxu0
          %v1105 = vadd.f32 %v1026, %v1104
          %1106 = vmatmul.bf16.gmra.mxu0 %v1061
          %v1107 = vpop.f32.mrf.mxu0
          %v1108 = vadd.f32 %v1029, %v1107
          %v1109 = vpop.f32.mrf.mxu0
          %v1110 = vadd.f32 %v1031, %v1109
          %1111 = vdwg.mxu0
          %v1112 = vld [vmem:[%s5] sm:$0x1]
          %v1114 = vperm.slane %v1112, 0
          %v1116 = vadd.f32 %v1073, %v1114
          %v1117 = vadd.f32 %v1075, %v1114
          %v1118 = vadd.f32 %v1078, %v1114
          %v1119 = vadd.f32 %v1080, %v1114
          %v1120 = vadd.f32 %v1083, %v1114
          %v1121 = vadd.f32 %v1085, %v1114
          %v1122 = vadd.f32 %v1088, %v1114
          %v1123 = vadd.f32 %v1090, %v1114
          %v1124 = vadd.f32 %v1093, %v1114
          %v1125 = vadd.f32 %v1095, %v1114
          %v1126 = vadd.f32 %v1098, %v1114
          %v1127 = vadd.f32 %v1100, %v1114
          %v1128 = vadd.f32 %v1103, %v1114
          %v1129 = vadd.f32 %v1105, %v1114
          %v1130 = vadd.f32 %v1108, %v1114
          %v1131 = vadd.f32 %v1110, %v1114
          %v1132 = vxor.u32 %v1116, 2147483648
          %v1133 = vxor.u32 %v1117, 2147483648
          %v1134 = vxor.u32 %v1118, 2147483648
          %v1135 = vxor.u32 %v1119, 2147483648
          %v1136 = vxor.u32 %v1120, 2147483648
          %v1137 = vxor.u32 %v1121, 2147483648
          %v1138 = vxor.u32 %v1122, 2147483648
          %v1139 = vxor.u32 %v1123, 2147483648
          %v1140 = vxor.u32 %v1124, 2147483648
          %v1141 = vxor.u32 %v1125, 2147483648
          %v1142 = vxor.u32 %v1126, 2147483648
          %v1143 = vxor.u32 %v1127, 2147483648
          %v1144 = vxor.u32 %v1128, 2147483648
          %v1145 = vxor.u32 %v1129, 2147483648
          %v1146 = vxor.u32 %v1130, 2147483648
          %v1147 = vxor.u32 %v1131, 2147483648
          %v1148 = vmul.f32 %v1132, 1.442695
          %v1149 = vpow.pop %v1148
          %v1150 = vmul.f32 %v1133, 1.442695
          %v1151 = vpow.pop %v1150
          %v1152 = vmul.f32 %v1134, 1.442695
          %v1153 = vpow.pop %v1152
          %v1154 = vmul.f32 %v1135, 1.442695
          %v1155 = vpow.pop %v1154
          %v1156 = vmul.f32 %v1136, 1.442695
          %v1157 = vpow.pop %v1156
          %v1158 = vmul.f32 %v1137, 1.442695
          %v1159 = vpow.pop %v1158
          %v1160 = vmul.f32 %v1138, 1.442695
          %v1161 = vpow.pop %v1160
          %v1162 = vmul.f32 %v1139, 1.442695
          %v1163 = vpow.pop %v1162
          %v1164 = vmul.f32 %v1140, 1.442695
          %v1165 = vpow.pop %v1164
          %v1166 = vmul.f32 %v1141, 1.442695
          %v1167 = vpow.pop %v1166
          %v1168 = vmul.f32 %v1142, 1.442695
          %v1169 = vpow.pop %v1168
          %v1170 = vmul.f32 %v1143, 1.442695
          %v1171 = vpow.pop %v1170
          %v1172 = vmul.f32 %v1144, 1.442695
          %v1173 = vpow.pop %v1172
          %v1174 = vmul.f32 %v1145, 1.442695
          %v1175 = vpow.pop %v1174
          %v1176 = vmul.f32 %v1146, 1.442695
          %v1177 = vpow.pop %v1176
          %v1178 = vmul.f32 %v1147, 1.442695
          %v1179 = vpow.pop %v1178
          %v1180 = vadd.f32 %v1149, 1.0
          %v1181 = vadd.f32 %v1151, 1.0
          %v1182 = vadd.f32 %v1153, 1.0
          %v1183 = vadd.f32 %v1155, 1.0
          %v1184 = vadd.f32 %v1157, 1.0
          %v1185 = vadd.f32 %v1159, 1.0
          %v1186 = vadd.f32 %v1161, 1.0
          %v1187 = vadd.f32 %v1163, 1.0
          %v1188 = vadd.f32 %v1165, 1.0
          %v1189 = vadd.f32 %v1167, 1.0
          %v1190 = vadd.f32 %v1169, 1.0
          %v1191 = vadd.f32 %v1171, 1.0
          %v1192 = vadd.f32 %v1173, 1.0
          %v1193 = vadd.f32 %v1175, 1.0
          %v1194 = vadd.f32 %v1177, 1.0
          %v1195 = vadd.f32 %v1179, 1.0
          %v1196 = vrcp.pop %v1180
          %v1197 = vmul.f32 %v1180, %v1196
          %v1198 = vsub.f32 1.0, %v1197
          %v1199 = vmul.f32 %v1196, %v1198
          %v1200 = vadd.f32 %v1196, %v1199
          %vm1201 = vweird.f32 %v1180
          %vm1202 = vweird.f32 %v1196
          %vm1203 = vmor %vm1201, %vm1202
          %v1204 = vsel %vm1203, %v1196, %v1200
          %v1205 = vand.u32 2147483647, %v1180
          %vm1206 = vcmp.eq.f32.partialorder %v1205, 8.507059e+37
          %v1207 = vand.u32 %v1180, 2147483648
          %v1208 = vor.u32 1.1754944e-38, %v1207
          %v1209 = vsel %vm1206, %v1208, %v1204
          %v1210 = vmul.f32 1.0, %v1209
          %v1211 = vrcp.pop %v1181
          %v1212 = vmul.f32 %v1181, %v1211
          %v1213 = vsub.f32 1.0, %v1212
          %v1214 = vmul.f32 %v1211, %v1213
          %v1215 = vadd.f32 %v1211, %v1214
          %vm1216 = vweird.f32 %v1181
          %vm1217 = vweird.f32 %v1211
          %vm1218 = vmor %vm1216, %vm1217
          %v1219 = vsel %vm1218, %v1211, %v1215
          %v1220 = vand.u32 2147483647, %v1181
          %vm1221 = vcmp.eq.f32.partialorder %v1220, 8.507059e+37
          %v1222 = vand.u32 %v1181, 2147483648
          %v1223 = vor.u32 1.1754944e-38, %v1222
          %v1224 = vsel %vm1221, %v1223, %v1219
          %v1225 = vmul.f32 1.0, %v1224
          %v1226 = vrcp.pop %v1182
          %v1227 = vmul.f32 %v1182, %v1226
          %v1228 = vsub.f32 1.0, %v1227
          %v1229 = vmul.f32 %v1226, %v1228
          %v1230 = vadd.f32 %v1226, %v1229
          %vm1231 = vweird.f32 %v1182
          %vm1232 = vweird.f32 %v1226
          %vm1233 = vmor %vm1231, %vm1232
          %v1234 = vsel %vm1233, %v1226, %v1230
          %v1235 = vand.u32 2147483647, %v1182
          %vm1236 = vcmp.eq.f32.partialorder %v1235, 8.507059e+37
          %v1237 = vand.u32 %v1182, 2147483648
          %v1238 = vor.u32 1.1754944e-38, %v1237
          %v1239 = vsel %vm1236, %v1238, %v1234
          %v1240 = vmul.f32 1.0, %v1239
          %v1241 = vrcp.pop %v1183
          %v1242 = vmul.f32 %v1183, %v1241
          %v1243 = vsub.f32 1.0, %v1242
          %v1244 = vmul.f32 %v1241, %v1243
          %v1245 = vadd.f32 %v1241, %v1244
          %vm1246 = vweird.f32 %v1183
          %vm1247 = vweird.f32 %v1241
          %vm1248 = vmor %vm1246, %vm1247
          %v1249 = vsel %vm1248, %v1241, %v1245
          %v1250 = vand.u32 2147483647, %v1183
          %vm1251 = vcmp.eq.f32.partialorder %v1250, 8.507059e+37
          %v1252 = vand.u32 %v1183, 2147483648
          %v1253 = vor.u32 1.1754944e-38, %v1252
          %v1254 = vsel %vm1251, %v1253, %v1249
          %v1255 = vmul.f32 1.0, %v1254
          %v1256 = vrcp.pop %v1184
          %v1257 = vmul.f32 %v1184, %v1256
          %v1258 = vsub.f32 1.0, %v1257
          %v1259 = vmul.f32 %v1256, %v1258
          %v1260 = vadd.f32 %v1256, %v1259
          %vm1261 = vweird.f32 %v1184
          %vm1262 = vweird.f32 %v1256
          %vm1263 = vmor %vm1261, %vm1262
          %v1264 = vsel %vm1263, %v1256, %v1260
          %v1265 = vand.u32 2147483647, %v1184
          %vm1266 = vcmp.eq.f32.partialorder %v1265, 8.507059e+37
          %v1267 = vand.u32 %v1184, 2147483648
          %v1268 = vor.u32 1.1754944e-38, %v1267
          %v1269 = vsel %vm1266, %v1268, %v1264
          %v1270 = vmul.f32 1.0, %v1269
          %v1271 = vrcp.pop %v1185
          %v1272 = vmul.f32 %v1185, %v1271
          %v1273 = vsub.f32 1.0, %v1272
          %v1274 = vmul.f32 %v1271, %v1273
          %v1275 = vadd.f32 %v1271, %v1274
          %vm1276 = vweird.f32 %v1185
          %vm1277 = vweird.f32 %v1271
          %vm1278 = vmor %vm1276, %vm1277
          %v1279 = vsel %vm1278, %v1271, %v1275
          %v1280 = vand.u32 2147483647, %v1185
          %vm1281 = vcmp.eq.f32.partialorder %v1280, 8.507059e+37
          %v1282 = vand.u32 %v1185, 2147483648
          %v1283 = vor.u32 1.1754944e-38, %v1282
          %v1284 = vsel %vm1281, %v1283, %v1279
          %v1285 = vmul.f32 1.0, %v1284
          %v1286 = vrcp.pop %v1186
          %v1287 = vmul.f32 %v1186, %v1286
          %v1288 = vsub.f32 1.0, %v1287
          %v1289 = vmul.f32 %v1286, %v1288
          %v1290 = vadd.f32 %v1286, %v1289
          %vm1291 = vweird.f32 %v1186
          %vm1292 = vweird.f32 %v1286
          %vm1293 = vmor %vm1291, %vm1292
          %v1294 = vsel %vm1293, %v1286, %v1290
          %v1295 = vand.u32 2147483647, %v1186
          %vm1296 = vcmp.eq.f32.partialorder %v1295, 8.507059e+37
          %v1297 = vand.u32 %v1186, 2147483648
          %v1298 = vor.u32 1.1754944e-38, %v1297
          %v1299 = vsel %vm1296, %v1298, %v1294
          %v1300 = vmul.f32 1.0, %v1299
          %v1301 = vrcp.pop %v1187
          %v1302 = vmul.f32 %v1187, %v1301
          %v1303 = vsub.f32 1.0, %v1302
          %v1304 = vmul.f32 %v1301, %v1303
          %v1305 = vadd.f32 %v1301, %v1304
          %vm1306 = vweird.f32 %v1187
          %vm1307 = vweird.f32 %v1301
          %vm1308 = vmor %vm1306, %vm1307
          %v1309 = vsel %vm1308, %v1301, %v1305
          %v1310 = vand.u32 2147483647, %v1187
          %vm1311 = vcmp.eq.f32.partialorder %v1310, 8.507059e+37
          %v1312 = vand.u32 %v1187, 2147483648
          %v1313 = vor.u32 1.1754944e-38, %v1312
          %v1314 = vsel %vm1311, %v1313, %v1309
          %v1315 = vmul.f32 1.0, %v1314
          %v1316 = vrcp.pop %v1188
          %v1317 = vmul.f32 %v1188, %v1316
          %v1318 = vsub.f32 1.0, %v1317
          %v1319 = vmul.f32 %v1316, %v1318
          %v1320 = vadd.f32 %v1316, %v1319
          %vm1321 = vweird.f32 %v1188
          %vm1322 = vweird.f32 %v1316
          %vm1323 = vmor %vm1321, %vm1322
          %v1324 = vsel %vm1323, %v1316, %v1320
          %v1325 = vand.u32 2147483647, %v1188
          %vm1326 = vcmp.eq.f32.partialorder %v1325, 8.507059e+37
          %v1327 = vand.u32 %v1188, 2147483648
          %v1328 = vor.u32 1.1754944e-38, %v1327
          %v1329 = vsel %vm1326, %v1328, %v1324
          %v1330 = vmul.f32 1.0, %v1329
          %v1331 = vrcp.pop %v1189
          %v1332 = vmul.f32 %v1189, %v1331
          %v1333 = vsub.f32 1.0, %v1332
          %v1334 = vmul.f32 %v1331, %v1333
          %v1335 = vadd.f32 %v1331, %v1334
          %vm1336 = vweird.f32 %v1189
          %vm1337 = vweird.f32 %v1331
          %vm1338 = vmor %vm1336, %vm1337
          %v1339 = vsel %vm1338, %v1331, %v1335
          %v1340 = vand.u32 2147483647, %v1189
          %vm1341 = vcmp.eq.f32.partialorder %v1340, 8.507059e+37
          %v1342 = vand.u32 %v1189, 2147483648
          %v1343 = vor.u32 1.1754944e-38, %v1342
          %v1344 = vsel %vm1341, %v1343, %v1339
          %v1345 = vmul.f32 1.0, %v1344
          %v1346 = vrcp.pop %v1190
          %v1347 = vmul.f32 %v1190, %v1346
          %v1348 = vsub.f32 1.0, %v1347
          %v1349 = vmul.f32 %v1346, %v1348
          %v1350 = vadd.f32 %v1346, %v1349
          %vm1351 = vweird.f32 %v1190
          %vm1352 = vweird.f32 %v1346
          %vm1353 = vmor %vm1351, %vm1352
          %v1354 = vsel %vm1353, %v1346, %v1350
          %v1355 = vand.u32 2147483647, %v1190
          %vm1356 = vcmp.eq.f32.partialorder %v1355, 8.507059e+37
          %v1357 = vand.u32 %v1190, 2147483648
          %v1358 = vor.u32 1.1754944e-38, %v1357
          %v1359 = vsel %vm1356, %v1358, %v1354
          %v1360 = vmul.f32 1.0, %v1359
          %v1361 = vrcp.pop %v1191
          %v1362 = vmul.f32 %v1191, %v1361
          %v1363 = vsub.f32 1.0, %v1362
          %v1364 = vmul.f32 %v1361, %v1363
          %v1365 = vadd.f32 %v1361, %v1364
          %vm1366 = vweird.f32 %v1191
          %vm1367 = vweird.f32 %v1361
          %vm1368 = vmor %vm1366, %vm1367
          %v1369 = vsel %vm1368, %v1361, %v1365
          %v1370 = vand.u32 2147483647, %v1191
          %vm1371 = vcmp.eq.f32.partialorder %v1370, 8.507059e+37
          %v1372 = vand.u32 %v1191, 2147483648
          %v1373 = vor.u32 1.1754944e-38, %v1372
          %v1374 = vsel %vm1371, %v1373, %v1369
          %v1375 = vmul.f32 1.0, %v1374
          %v1376 = vrcp.pop %v1192
          %v1377 = vmul.f32 %v1192, %v1376
          %v1378 = vsub.f32 1.0, %v1377
          %v1379 = vmul.f32 %v1376, %v1378
          %v1380 = vadd.f32 %v1376, %v1379
          %vm1381 = vweird.f32 %v1192
          %vm1382 = vweird.f32 %v1376
          %vm1383 = vmor %vm1381, %vm1382
          %v1384 = vsel %vm1383, %v1376, %v1380
          %v1385 = vand.u32 2147483647, %v1192
          %vm1386 = vcmp.eq.f32.partialorder %v1385, 8.507059e+37
          %v1387 = vand.u32 %v1192, 2147483648
          %v1388 = vor.u32 1.1754944e-38, %v1387
          %v1389 = vsel %vm1386, %v1388, %v1384
          %v1390 = vmul.f32 1.0, %v1389
          %v1391 = vrcp.pop %v1193
          %v1392 = vmul.f32 %v1193, %v1391
          %v1393 = vsub.f32 1.0, %v1392
          %v1394 = vmul.f32 %v1391, %v1393
          %v1395 = vadd.f32 %v1391, %v1394
          %vm1396 = vweird.f32 %v1193
          %vm1397 = vweird.f32 %v1391
          %vm1398 = vmor %vm1396, %vm1397
          %v1399 = vsel %vm1398, %v1391, %v1395
          %v1400 = vand.u32 2147483647, %v1193
          %vm1401 = vcmp.eq.f32.partialorder %v1400, 8.507059e+37
          %v1402 = vand.u32 %v1193, 2147483648
          %v1403 = vor.u32 1.1754944e-38, %v1402
          %v1404 = vsel %vm1401, %v1403, %v1399
          %v1405 = vmul.f32 1.0, %v1404
          %v1406 = vrcp.pop %v1194
          %v1407 = vmul.f32 %v1194, %v1406
          %v1408 = vsub.f32 1.0, %v1407
          %v1409 = vmul.f32 %v1406, %v1408
          %v1410 = vadd.f32 %v1406, %v1409
          %vm1411 = vweird.f32 %v1194
          %vm1412 = vweird.f32 %v1406
          %vm1413 = vmor %vm1411, %vm1412
          %v1414 = vsel %vm1413, %v1406, %v1410
          %v1415 = vand.u32 2147483647, %v1194
          %vm1416 = vcmp.eq.f32.partialorder %v1415, 8.507059e+37
          %v1417 = vand.u32 %v1194, 2147483648
          %v1418 = vor.u32 1.1754944e-38, %v1417
          %v1419 = vsel %vm1416, %v1418, %v1414
          %v1420 = vmul.f32 1.0, %v1419
          %v1421 = vrcp.pop %v1195
          %v1422 = vmul.f32 %v1195, %v1421
          %v1423 = vsub.f32 1.0, %v1422
          %v1424 = vmul.f32 %v1421, %v1423
          %v1425 = vadd.f32 %v1421, %v1424
          %vm1426 = vweird.f32 %v1195
          %vm1427 = vweird.f32 %v1421
          %vm1428 = vmor %vm1426, %vm1427
          %v1429 = vsel %vm1428, %v1421, %v1425
          %v1430 = vand.u32 2147483647, %v1195
          %vm1431 = vcmp.eq.f32.partialorder %v1430, 8.507059e+37
          %v1432 = vand.u32 %v1195, 2147483648
          %v1433 = vor.u32 1.1754944e-38, %v1432
          %v1434 = vsel %vm1431, %v1433, %v1429
          %v1435 = vmul.f32 1.0, %v1434
          %v1436 = vmul.f32 %v1116, %v1210
          %v1437 = vmul.f32 %v1117, %v1225
          %v1438 = vmul.f32 %v1118, %v1240
          %v1439 = vmul.f32 %v1119, %v1255
          %v1440 = vmul.f32 %v1120, %v1270
          %v1441 = vmul.f32 %v1121, %v1285
          %v1442 = vmul.f32 %v1122, %v1300
          %v1443 = vmul.f32 %v1123, %v1315
          %v1444 = vmul.f32 %v1124, %v1330
          %v1445 = vmul.f32 %v1125, %v1345
          %v1446 = vmul.f32 %v1126, %v1360
          %v1447 = vmul.f32 %v1127, %v1375
          %v1448 = vmul.f32 %v1128, %v1390
          %v1449 = vmul.f32 %v1129, %v1405
          %v1450 = vmul.f32 %v1130, %v1420
          %v1451 = vmul.f32 %v1131, %v1435
          %v1452 = vpack.c.bf16 %v1437, %v1436
          %v1453 = vpack.c.bf16 %v1439, %v1438
          %v1454 = vpack.c.bf16 %v1441, %v1440
          %v1455 = vpack.c.bf16 %v1443, %v1442
          %v1456 = vpack.c.bf16 %v1445, %v1444
          %v1457 = vpack.c.bf16 %v1447, %v1446
          %v1458 = vpack.c.bf16 %v1449, %v1448
          %v1459 = vpack.c.bf16 %v1451, %v1450
          %v1460 = vld [vmem:[%s6] sm:$0xf]
          %v1461 = vld [vmem:[%s6 + $0x4] sm:$0xf]
          %v1462 = vld [vmem:[%s6 + $0x8] sm:$0xf]
          %v1463 = vld [vmem:[%s6 + $0xc] sm:$0xf]
          %v1464 = vld [vmem:[%s6 + $0x10] sm:$0xf]
          %v1465 = vld [vmem:[%s6 + $0x14] sm:$0xf]
          %v1466 = vld [vmem:[%s6 + $0x18] sm:$0xf]
          %v1467 = vld [vmem:[%s6 + $0x1c] sm:$0xf]
          %v1468 = vld [vmem:[%s6 + $0x20] sm:$0xf]
          %v1469 = vld [vmem:[%s6 + $0x24] sm:$0xf]
          %v1470 = vld [vmem:[%s6 + $0x28] sm:$0xf]
          %v1471 = vld [vmem:[%s6 + $0x2c] sm:$0xf]
          %v1472 = vld [vmem:[%s6 + $0x30] sm:$0xf]
          %v1473 = vld [vmem:[%s6 + $0x34] sm:$0xf]
          %v1474 = vld [vmem:[%s6 + $0x38] sm:$0xf]
          %v1475 = vld [vmem:[%s6 + $0x3c] sm:$0xf]
          %v1476 = vld [vmem:[%s7] sm:$0x1]
          %v1478 = vperm.slane %v1476, 0
          %v1496 = vunpack.c.l.b16 %v1460
          %v1497 = vunpack.c.l.b16 %v1461
          %v1498 = vunpack.c.l.b16 %v1462
          %v1499 = vunpack.c.l.b16 %v1463
          %v1500 = vunpack.c.l.b16 %v1464
          %v1501 = vunpack.c.l.b16 %v1465
          %v1502 = vunpack.c.l.b16 %v1466
          %v1503 = vunpack.c.l.b16 %v1467
          %v1504 = vunpack.c.l.b16 %v1468
          %v1505 = vunpack.c.l.b16 %v1469
          %v1506 = vunpack.c.l.b16 %v1470
          %v1507 = vunpack.c.l.b16 %v1471
          %v1508 = vunpack.c.l.b16 %v1472
          %v1509 = vunpack.c.l.b16 %v1473
          %v1510 = vunpack.c.l.b16 %v1474
          %v1511 = vunpack.c.l.b16 %v1475
          %v1512 = vpack.c.b16 %v1497, %v1496
          %v1513 = vpack.c.b16 %v1499, %v1498
          %v1514 = vpack.c.b16 %v1501, %v1500
          %v1515 = vpack.c.b16 %v1503, %v1502
          %v1516 = vpack.c.b16 %v1505, %v1504
          %v1517 = vpack.c.b16 %v1507, %v1506
          %v1518 = vpack.c.b16 %v1509, %v1508
          %v1519 = vpack.c.b16 %v1511, %v1510
          %1528 = vmatpush.bf16.msra.mxu0 %v1519
          %1529 = vmatpush.bf16.msra.mxu0 %v1518
          %1530 = vmatpush.bf16.msra.mxu0 %v1517
          %1531 = vmatpush.bf16.msra.mxu0 %v1516
          %1532 = vmatpush.bf16.msra.mxu0 %v1515
          %1533 = vmatpush.bf16.msra.mxu0 %v1514
          %1534 = vmatpush.bf16.msra.mxu0 %v1513
          %1535 = vmatpush.bf16.msra.mxu0 %v1512
          %1536 = vmatmul.bf16.gmra.mxu0 %v1452
          %v1537 = vpop.f32.mrf.mxu0
          %v1538 = vadd.f32 %v1478, %v1537
          %v1539 = vpop.f32.mrf.mxu0
          %v1540 = vadd.f32 %v1478, %v1539
          %1541 = vmatmul.bf16.gmra.mxu0 %v1453
          %v1542 = vpop.f32.mrf.mxu0
          %v1543 = vadd.f32 %v1478, %v1542
          %v1544 = vpop.f32.mrf.mxu0
          %v1545 = vadd.f32 %v1478, %v1544
          %1546 = vmatmul.bf16.gmra.mxu0 %v1454
          %v1547 = vpop.f32.mrf.mxu0
          %v1548 = vadd.f32 %v1478, %v1547
          %v1549 = vpop.f32.mrf.mxu0
          %v1550 = vadd.f32 %v1478, %v1549
          %1551 = vmatmul.bf16.gmra.mxu0 %v1455
          %v1552 = vpop.f32.mrf.mxu0
          %v1553 = vadd.f32 %v1478, %v1552
          %v1554 = vpop.f32.mrf.mxu0
          %v1555 = vadd.f32 %v1478, %v1554
          %1556 = vmatmul.bf16.gmra.mxu0 %v1456
          %v1557 = vpop.f32.mrf.mxu0
          %v1558 = vadd.f32 %v1478, %v1557
          %v1559 = vpop.f32.mrf.mxu0
          %v1560 = vadd.f32 %v1478, %v1559
          %1561 = vmatmul.bf16.gmra.mxu0 %v1457
          %v1562 = vpop.f32.mrf.mxu0
          %v1563 = vadd.f32 %v1478, %v1562
          %v1564 = vpop.f32.mrf.mxu0
          %v1565 = vadd.f32 %v1478, %v1564
          %1566 = vmatmul.bf16.gmra.mxu0 %v1458
          %v1567 = vpop.f32.mrf.mxu0
          %v1568 = vadd.f32 %v1478, %v1567
          %v1569 = vpop.f32.mrf.mxu0
          %v1570 = vadd.f32 %v1478, %v1569
          %1571 = vmatmul.bf16.gmra.mxu0 %v1459
          %v1572 = vpop.f32.mrf.mxu0
          %v1573 = vadd.f32 %v1478, %v1572
          %v1574 = vpop.f32.mrf.mxu0
          %v1575 = vadd.f32 %v1478, %v1574
          %1576 = vdwg.mxu0
          %1577 = vadd.xlane.f32.xlu0 %v1538
          %v1578 = vpop.xlane.xlu0 %1577
          %1579 = vadd.xlane.f32.xlu0 %v1540
          %v1580 = vpop.xlane.xlu0 %1579
          %1581 = vadd.xlane.f32.xlu0 %v1543
          %v1582 = vpop.xlane.xlu0 %1581
          %1583 = vadd.xlane.f32.xlu0 %v1545
          %v1584 = vpop.xlane.xlu0 %1583
          %1585 = vadd.xlane.f32.xlu0 %v1548
          %v1586 = vpop.xlane.xlu0 %1585
          %1587 = vadd.xlane.f32.xlu0 %v1550
          %v1588 = vpop.xlane.xlu0 %1587
          %1589 = vadd.xlane.f32.xlu0 %v1553
          %v1590 = vpop.xlane.xlu0 %1589
          %1591 = vadd.xlane.f32.xlu0 %v1555
          %v1592 = vpop.xlane.xlu0 %1591
          %1593 = vadd.xlane.f32.xlu0 %v1558
          %v1594 = vpop.xlane.xlu0 %1593
          %1595 = vadd.xlane.f32.xlu0 %v1560
          %v1596 = vpop.xlane.xlu0 %1595
          %1597 = vadd.xlane.f32.xlu0 %v1563
          %v1598 = vpop.xlane.xlu0 %1597
          %1599 = vadd.xlane.f32.xlu0 %v1565
          %v1600 = vpop.xlane.xlu0 %1599
          %1601 = vadd.xlane.f32.xlu0 %v1568
          %v1602 = vpop.xlane.xlu0 %1601
          %1603 = vadd.xlane.f32.xlu0 %v1570
          %v1604 = vpop.xlane.xlu0 %1603
          %1605 = vadd.xlane.f32.xlu0 %v1573
          %v1606 = vpop.xlane.xlu0 %1605
          %1607 = vadd.xlane.f32.xlu0 %v1575
          %v1608 = vpop.xlane.xlu0 %1607
          %v1609 = vrcp.pop 128.0
          %v1610 = vmul.f32 128.0, %v1609
          %v1611 = vsub.f32 1.0, %v1610
          %v1612 = vmul.f32 %v1609, %v1611
          %v1613 = vadd.f32 %v1609, %v1612
          %vm1614 = vweird.f32 %v1609
          %v1615 = vsel %vm1614, %v1609, %v1613
          %v1616 = vmul.f32 %v1578, %v1615
          %v1617 = vmul.f32 %v1580, %v1615
          %v1618 = vmul.f32 %v1582, %v1615
          %v1619 = vmul.f32 %v1584, %v1615
          %v1620 = vmul.f32 %v1586, %v1615
          %v1621 = vmul.f32 %v1588, %v1615
          %v1622 = vmul.f32 %v1590, %v1615
          %v1623 = vmul.f32 %v1592, %v1615
          %v1624 = vmul.f32 %v1594, %v1615
          %v1625 = vmul.f32 %v1596, %v1615
          %v1626 = vmul.f32 %v1598, %v1615
          %v1627 = vmul.f32 %v1600, %v1615
          %v1628 = vmul.f32 %v1602, %v1615
          %v1629 = vmul.f32 %v1604, %v1615
          %v1630 = vmul.f32 %v1606, %v1615
          %v1631 = vmul.f32 %v1608, %v1615
          %v1632 = vsub.f32 %v1538, %v1616
          %v1633 = vsub.f32 %v1540, %v1617
          %v1634 = vsub.f32 %v1543, %v1618
          %v1635 = vsub.f32 %v1545, %v1619
          %v1636 = vsub.f32 %v1548, %v1620
          %v1637 = vsub.f32 %v1550, %v1621
          %v1638 = vsub.f32 %v1553, %v1622
          %v1639 = vsub.f32 %v1555, %v1623
          %v1640 = vsub.f32 %v1558, %v1624
          %v1641 = vsub.f32 %v1560, %v1625
          %v1642 = vsub.f32 %v1563, %v1626
          %v1643 = vsub.f32 %v1565, %v1627
          %v1644 = vsub.f32 %v1568, %v1628
          %v1645 = vsub.f32 %v1570, %v1629
          %v1646 = vsub.f32 %v1573, %v1630
          %v1647 = vsub.f32 %v1575, %v1631
          %v1648 = vmul.f32 %v1632, %v1632
          %v1649 = vmul.f32 %v1633, %v1633
          %v1650 = vmul.f32 %v1634, %v1634
          %v1651 = vmul.f32 %v1635, %v1635
          %v1652 = vmul.f32 %v1636, %v1636
          %v1653 = vmul.f32 %v1637, %v1637
          %v1654 = vmul.f32 %v1638, %v1638
          %v1655 = vmul.f32 %v1639, %v1639
          %v1656 = vmul.f32 %v1640, %v1640
          %v1657 = vmul.f32 %v1641, %v1641
          %v1658 = vmul.f32 %v1642, %v1642
          %v1659 = vmul.f32 %v1643, %v1643
          %v1660 = vmul.f32 %v1644, %v1644
          %v1661 = vmul.f32 %v1645, %v1645
          %v1662 = vmul.f32 %v1646, %v1646
          %v1663 = vmul.f32 %v1647, %v1647
          %1664 = vadd.xlane.f32.xlu0 %v1648
          %v1665 = vpop.xlane.xlu0 %1664
          %1666 = vadd.xlane.f32.xlu0 %v1649
          %v1667 = vpop.xlane.xlu0 %1666
          %1668 = vadd.xlane.f32.xlu0 %v1650
          %v1669 = vpop.xlane.xlu0 %1668
          %1670 = vadd.xlane.f32.xlu0 %v1651
          %v1671 = vpop.xlane.xlu0 %1670
          %1672 = vadd.xlane.f32.xlu0 %v1652
          %v1673 = vpop.xlane.xlu0 %1672
          %1674 = vadd.xlane.f32.xlu0 %v1653
          %v1675 = vpop.xlane.xlu0 %1674
          %1676 = vadd.xlane.f32.xlu0 %v1654
          %v1677 = vpop.xlane.xlu0 %1676
          %1678 = vadd.xlane.f32.xlu0 %v1655
          %v1679 = vpop.xlane.xlu0 %1678
          %1680 = vadd.xlane.f32.xlu0 %v1656
          %v1681 = vpop.xlane.xlu0 %1680
          %1682 = vadd.xlane.f32.xlu0 %v1657
          %v1683 = vpop.xlane.xlu0 %1682
          %1684 = vadd.xlane.f32.xlu0 %v1658
          %v1685 = vpop.xlane.xlu0 %1684
          %1686 = vadd.xlane.f32.xlu0 %v1659
          %v1687 = vpop.xlane.xlu0 %1686
          %1688 = vadd.xlane.f32.xlu0 %v1660
          %v1689 = vpop.xlane.xlu0 %1688
          %1690 = vadd.xlane.f32.xlu0 %v1661
          %v1691 = vpop.xlane.xlu0 %1690
          %1692 = vadd.xlane.f32.xlu0 %v1662
          %v1693 = vpop.xlane.xlu0 %1692
          %1694 = vadd.xlane.f32.xlu0 %v1663
          %v1695 = vpop.xlane.xlu0 %1694
          %v1696 = vmul.f32 %v1665, %v1615
          %v1697 = vmul.f32 %v1667, %v1615
          %v1698 = vmul.f32 %v1669, %v1615
          %v1699 = vmul.f32 %v1671, %v1615
          %v1700 = vmul.f32 %v1673, %v1615
          %v1701 = vmul.f32 %v1675, %v1615
          %v1702 = vmul.f32 %v1677, %v1615
          %v1703 = vmul.f32 %v1679, %v1615
          %v1704 = vmul.f32 %v1681, %v1615
          %v1705 = vmul.f32 %v1683, %v1615
          %v1706 = vmul.f32 %v1685, %v1615
          %v1707 = vmul.f32 %v1687, %v1615
          %v1708 = vmul.f32 %v1689, %v1615
          %v1709 = vmul.f32 %v1691, %v1615
          %v1710 = vmul.f32 %v1693, %v1615
          %v1711 = vmul.f32 %v1695, %v1615
          %v1712 = vadd.f32 %v1696, 1e-05
          %v1713 = vadd.f32 %v1697, 1e-05
          %v1714 = vadd.f32 %v1698, 1e-05
          %v1715 = vadd.f32 %v1699, 1e-05
          %v1716 = vadd.f32 %v1700, 1e-05
          %v1717 = vadd.f32 %v1701, 1e-05
          %v1718 = vadd.f32 %v1702, 1e-05
          %v1719 = vadd.f32 %v1703, 1e-05
          %v1720 = vadd.f32 %v1704, 1e-05
          %v1721 = vadd.f32 %v1705, 1e-05
          %v1722 = vadd.f32 %v1706, 1e-05
          %v1723 = vadd.f32 %v1707, 1e-05
          %v1724 = vadd.f32 %v1708, 1e-05
          %v1725 = vadd.f32 %v1709, 1e-05
          %v1726 = vadd.f32 %v1710, 1e-05
          %v1727 = vadd.f32 %v1711, 1e-05
          %v1728 = vrsqrt.pop %v1712
          %v1729 = vmul.f32 %v1728, %v1712
          %v1730 = vmul.f32 %v1729, %v1728
          %v1731 = vmul.f32 0.5, %v1730
          %v1732 = vsub.f32 1.5, %v1731
          %v1733 = vmul.f32 %v1728, %v1732
          %vm1734 = vweird.f32 %v1712
          %vm1735 = vweird.f32 %v1728
          %vm1736 = vmor %vm1734, %vm1735
          %v1737 = vsel %vm1736, %v1728, %v1733
          %v1738 = vrsqrt.pop %v1713
          %v1739 = vmul.f32 %v1738, %v1713
          %v1740 = vmul.f32 %v1739, %v1738
          %v1741 = vmul.f32 0.5, %v1740
          %v1742 = vsub.f32 1.5, %v1741
          %v1743 = vmul.f32 %v1738, %v1742
          %vm1744 = vweird.f32 %v1713
          %vm1745 = vweird.f32 %v1738
          %vm1746 = vmor %vm1744, %vm1745
          %v1747 = vsel %vm1746, %v1738, %v1743
          %v1748 = vrsqrt.pop %v1714
          %v1749 = vmul.f32 %v1748, %v1714
          %v1750 = vmul.f32 %v1749, %v1748
          %v1751 = vmul.f32 0.5, %v1750
          %v1752 = vsub.f32 1.5, %v1751
          %v1753 = vmul.f32 %v1748, %v1752
          %vm1754 = vweird.f32 %v1714
          %vm1755 = vweird.f32 %v1748
          %vm1756 = vmor %vm1754, %vm1755
          %v1757 = vsel %vm1756, %v1748, %v1753
          %v1758 = vrsqrt.pop %v1715
          %v1759 = vmul.f32 %v1758, %v1715
          %v1760 = vmul.f32 %v1759, %v1758
          %v1761 = vmul.f32 0.5, %v1760
          %v1762 = vsub.f32 1.5, %v1761
          %v1763 = vmul.f32 %v1758, %v1762
          %vm1764 = vweird.f32 %v1715
          %vm1765 = vweird.f32 %v1758
          %vm1766 = vmor %vm1764, %vm1765
          %v1767 = vsel %vm1766, %v1758, %v1763
          %v1768 = vrsqrt.pop %v1716
          %v1769 = vmul.f32 %v1768, %v1716
          %v1770 = vmul.f32 %v1769, %v1768
          %v1771 = vmul.f32 0.5, %v1770
          %v1772 = vsub.f32 1.5, %v1771
          %v1773 = vmul.f32 %v1768, %v1772
          %vm1774 = vweird.f32 %v1716
          %vm1775 = vweird.f32 %v1768
          %vm1776 = vmor %vm1774, %vm1775
          %v1777 = vsel %vm1776, %v1768, %v1773
          %v1778 = vrsqrt.pop %v1717
          %v1779 = vmul.f32 %v1778, %v1717
          %v1780 = vmul.f32 %v1779, %v1778
          %v1781 = vmul.f32 0.5, %v1780
          %v1782 = vsub.f32 1.5, %v1781
          %v1783 = vmul.f32 %v1778, %v1782
          %vm1784 = vweird.f32 %v1717
          %vm1785 = vweird.f32 %v1778
          %vm1786 = vmor %vm1784, %vm1785
          %v1787 = vsel %vm1786, %v1778, %v1783
          %v1788 = vrsqrt.pop %v1718
          %v1789 = vmul.f32 %v1788, %v1718
          %v1790 = vmul.f32 %v1789, %v1788
          %v1791 = vmul.f32 0.5, %v1790
          %v1792 = vsub.f32 1.5, %v1791
          %v1793 = vmul.f32 %v1788, %v1792
          %vm1794 = vweird.f32 %v1718
          %vm1795 = vweird.f32 %v1788
          %vm1796 = vmor %vm1794, %vm1795
          %v1797 = vsel %vm1796, %v1788, %v1793
          %v1798 = vrsqrt.pop %v1719
          %v1799 = vmul.f32 %v1798, %v1719
          %v1800 = vmul.f32 %v1799, %v1798
          %v1801 = vmul.f32 0.5, %v1800
          %v1802 = vsub.f32 1.5, %v1801
          %v1803 = vmul.f32 %v1798, %v1802
          %vm1804 = vweird.f32 %v1719
          %vm1805 = vweird.f32 %v1798
          %vm1806 = vmor %vm1804, %vm1805
          %v1807 = vsel %vm1806, %v1798, %v1803
          %v1808 = vrsqrt.pop %v1720
          %v1809 = vmul.f32 %v1808, %v1720
          %v1810 = vmul.f32 %v1809, %v1808
          %v1811 = vmul.f32 0.5, %v1810
          %v1812 = vsub.f32 1.5, %v1811
          %v1813 = vmul.f32 %v1808, %v1812
          %vm1814 = vweird.f32 %v1720
          %vm1815 = vweird.f32 %v1808
          %vm1816 = vmor %vm1814, %vm1815
          %v1817 = vsel %vm1816, %v1808, %v1813
          %v1818 = vrsqrt.pop %v1721
          %v1819 = vmul.f32 %v1818, %v1721
          %v1820 = vmul.f32 %v1819, %v1818
          %v1821 = vmul.f32 0.5, %v1820
          %v1822 = vsub.f32 1.5, %v1821
          %v1823 = vmul.f32 %v1818, %v1822
          %vm1824 = vweird.f32 %v1721
          %vm1825 = vweird.f32 %v1818
          %vm1826 = vmor %vm1824, %vm1825
          %v1827 = vsel %vm1826, %v1818, %v1823
          %v1828 = vrsqrt.pop %v1722
          %v1829 = vmul.f32 %v1828, %v1722
          %v1830 = vmul.f32 %v1829, %v1828
          %v1831 = vmul.f32 0.5, %v1830
          %v1832 = vsub.f32 1.5, %v1831
          %v1833 = vmul.f32 %v1828, %v1832
          %vm1834 = vweird.f32 %v1722
          %vm1835 = vweird.f32 %v1828
          %vm1836 = vmor %vm1834, %vm1835
          %v1837 = vsel %vm1836, %v1828, %v1833
          %v1838 = vrsqrt.pop %v1723
          %v1839 = vmul.f32 %v1838, %v1723
          %v1840 = vmul.f32 %v1839, %v1838
          %v1841 = vmul.f32 0.5, %v1840
          %v1842 = vsub.f32 1.5, %v1841
          %v1843 = vmul.f32 %v1838, %v1842
          %vm1844 = vweird.f32 %v1723
          %vm1845 = vweird.f32 %v1838
          %vm1846 = vmor %vm1844, %vm1845
          %v1847 = vsel %vm1846, %v1838, %v1843
          %v1848 = vrsqrt.pop %v1724
          %v1849 = vmul.f32 %v1848, %v1724
          %v1850 = vmul.f32 %v1849, %v1848
          %v1851 = vmul.f32 0.5, %v1850
          %v1852 = vsub.f32 1.5, %v1851
          %v1853 = vmul.f32 %v1848, %v1852
          %vm1854 = vweird.f32 %v1724
          %vm1855 = vweird.f32 %v1848
          %vm1856 = vmor %vm1854, %vm1855
          %v1857 = vsel %vm1856, %v1848, %v1853
          %v1858 = vrsqrt.pop %v1725
          %v1859 = vmul.f32 %v1858, %v1725
          %v1860 = vmul.f32 %v1859, %v1858
          %v1861 = vmul.f32 0.5, %v1860
          %v1862 = vsub.f32 1.5, %v1861
          %v1863 = vmul.f32 %v1858, %v1862
          %vm1864 = vweird.f32 %v1725
          %vm1865 = vweird.f32 %v1858
          %vm1866 = vmor %vm1864, %vm1865
          %v1867 = vsel %vm1866, %v1858, %v1863
          %v1868 = vrsqrt.pop %v1726
          %v1869 = vmul.f32 %v1868, %v1726
          %v1870 = vmul.f32 %v1869, %v1868
          %v1871 = vmul.f32 0.5, %v1870
          %v1872 = vsub.f32 1.5, %v1871
          %v1873 = vmul.f32 %v1868, %v1872
          %vm1874 = vweird.f32 %v1726
          %vm1875 = vweird.f32 %v1868
          %vm1876 = vmor %vm1874, %vm1875
          %v1877 = vsel %vm1876, %v1868, %v1873
          %v1878 = vrsqrt.pop %v1727
          %v1879 = vmul.f32 %v1878, %v1727
          %v1880 = vmul.f32 %v1879, %v1878
          %v1881 = vmul.f32 0.5, %v1880
          %v1882 = vsub.f32 1.5, %v1881
          %v1883 = vmul.f32 %v1878, %v1882
          %vm1884 = vweird.f32 %v1727
          %vm1885 = vweird.f32 %v1878
          %vm1886 = vmor %vm1884, %vm1885
          %v1887 = vsel %vm1886, %v1878, %v1883
          %v1888 = vmul.f32 %v1632, %v1737
          %v1889 = vmul.f32 %v1633, %v1747
          %v1890 = vmul.f32 %v1634, %v1757
          %v1891 = vmul.f32 %v1635, %v1767
          %v1892 = vmul.f32 %v1636, %v1777
          %v1893 = vmul.f32 %v1637, %v1787
          %v1894 = vmul.f32 %v1638, %v1797
          %v1895 = vmul.f32 %v1639, %v1807
          %v1896 = vmul.f32 %v1640, %v1817
          %v1897 = vmul.f32 %v1641, %v1827
          %v1898 = vmul.f32 %v1642, %v1837
          %v1899 = vmul.f32 %v1643, %v1847
          %v1900 = vmul.f32 %v1644, %v1857
          %v1901 = vmul.f32 %v1645, %v1867
          %v1902 = vmul.f32 %v1646, %v1877
          %v1903 = vmul.f32 %v1647, %v1887
          %v1904 = vld [vmem:[%s8] sm:$0x1]
          %v1906 = vperm.slane %v1904, 0
          %v1908 = vmul.f32 %v1888, %v1906
          %v1909 = vmul.f32 %v1889, %v1906
          %v1910 = vmul.f32 %v1890, %v1906
          %v1911 = vmul.f32 %v1891, %v1906
          %v1912 = vmul.f32 %v1892, %v1906
          %v1913 = vmul.f32 %v1893, %v1906
          %v1914 = vmul.f32 %v1894, %v1906
          %v1915 = vmul.f32 %v1895, %v1906
          %v1916 = vmul.f32 %v1896, %v1906
          %v1917 = vmul.f32 %v1897, %v1906
          %v1918 = vmul.f32 %v1898, %v1906
          %v1919 = vmul.f32 %v1899, %v1906
          %v1920 = vmul.f32 %v1900, %v1906
          %v1921 = vmul.f32 %v1901, %v1906
          %v1922 = vmul.f32 %v1902, %v1906
          %v1923 = vmul.f32 %v1903, %v1906
          %v1924 = vld [vmem:[%s9] sm:$0x1]
          %v1926 = vperm.slane %v1924, 0
          %v1928 = vadd.f32 %v1908, %v1926
          %v1929 = vadd.f32 %v1909, %v1926
          %v1930 = vadd.f32 %v1910, %v1926
          %v1931 = vadd.f32 %v1911, %v1926
          %v1932 = vadd.f32 %v1912, %v1926
          %v1933 = vadd.f32 %v1913, %v1926
          %v1934 = vadd.f32 %v1914, %v1926
          %v1935 = vadd.f32 %v1915, %v1926
          %v1936 = vadd.f32 %v1916, %v1926
          %v1937 = vadd.f32 %v1917, %v1926
          %v1938 = vadd.f32 %v1918, %v1926
          %v1939 = vadd.f32 %v1919, %v1926
          %v1940 = vadd.f32 %v1920, %v1926
          %v1941 = vadd.f32 %v1921, %v1926
          %v1942 = vadd.f32 %v1922, %v1926
          %v1943 = vadd.f32 %v1923, %v1926
          %1944 = vst [vmem:[%s424] sm:$0xff] %v1928
          %1945 = vst [vmem:[%s424 + $0x8] sm:$0xff] %v1929
          %1946 = vst [vmem:[%s424 + $0x10] sm:$0xff] %v1930
          %1947 = vst [vmem:[%s424 + $0x18] sm:$0xff] %v1931
          %1948 = vst [vmem:[%s424 + $0x20] sm:$0xff] %v1932
          %1949 = vst [vmem:[%s424 + $0x28] sm:$0xff] %v1933
          %1950 = vst [vmem:[%s424 + $0x30] sm:$0xff] %v1934
          %1951 = vst [vmem:[%s424 + $0x38] sm:$0xff] %v1935
          %1952 = vst [vmem:[%s424 + $0x40] sm:$0xff] %v1936
          %1953 = vst [vmem:[%s424 + $0x48] sm:$0xff] %v1937
          %1954 = vst [vmem:[%s424 + $0x50] sm:$0xff] %v1938
          %1955 = vst [vmem:[%s424 + $0x58] sm:$0xff] %v1939
          %1956 = vst [vmem:[%s424 + $0x60] sm:$0xff] %v1940
          %1957 = vst [vmem:[%s424 + $0x68] sm:$0xff] %v1941
          %1958 = vst [vmem:[%s424 + $0x70] sm:$0xff] %v1942
          %1959 = vst [vmem:[%s424 + $0x78] sm:$0xff] %v1943
        $region68: #{tpu_custom_call.1} parent=59 // pred_fallthru
          _
        %s1960 = sand.u32 %s282, 1
        %s1961 = scalar_lea.sflag [#allocation4], %s1960
        %s1962 = sand.u32 %s282, 1
        %s1963 = smul.addr %s1962, 128
        %s1964 = scalar_lea.vmem [#allocation3], %s1963
        // Predicated region
        $region69: #{tpu_custom_call.1} parent=59 // pred_check
          %p1965 = pneg %p292
        $region70: #{tpu_custom_call.1} parent=59 // pred_check_branch
          %1967 = sbr.rel (%p1965) target = $region72
        $region71: #{tpu_custom_call.1} parent=59 // pred_region
          %s1968 = smul.u32 16, %s29
          %1970 = vsyncadd %s1961, 0
          %s1971 = smul.addr %s30, 32
          %s1972 = sadd.s32 %s1968, %s1971
          %s1973 = smul.addr %s1972, 8
          %s1974 = scalar_lea.hbm %s10, %s1973
          %s1975 = sshll.u32 %s1964, 4
          %s1976 = int_to_ptr.vmem [resolvable:$true] %s1975
          %s1977 = sshll.u32 %s1974, 4
          %s1978 = int_to_ptr.hbm [resolvable:$true] %s1977
          %1983 = dma.vmem_to_hbm [thread:$0]  %s1976, 2048, %s1978, %s1961, 128, 128, 8
        $region72: #{tpu_custom_call.1} parent=59 // pred_fallthru
          _
      $region60: #{tpu_custom_call.1} parent=5 // pred_fallthru
        _
      %p1984 = scmp.le.s32.totalorder 2, %s19
      // Predicated region
      $region73: #{tpu_custom_call.1} parent=5 // pred_check
        %p1985 = pneg %p1984
      $region74: #{tpu_custom_call.1} parent=5 // pred_check_branch
        %1987 = sbr.rel (%p1985) target = $region76
      $region75: #{tpu_custom_call.1} parent=5 // pred_region
        %s1988 = ssub.s32 %s19, 2
        // Predicated region
        $region77: #{tpu_custom_call.1} parent=75 // pred_check
          %p1989 = pneg %p298
        $region78: #{tpu_custom_call.1} parent=75 // pred_check_branch
          %1991 = sbr.rel (%p1989) target = $region80
        $region79: #{tpu_custom_call.1} parent=75 // pred_region
          %s1992 = sand.u32 %s283, 1
          %s1993 = scalar_lea.sflag [#allocation4], %s1992
          %s1994 = sand.u32 %s283, 1
          %s1995 = smul.addr %s1994, 128
          %s1996 = scalar_lea.vmem [#allocation3], %s1995
          %1998 = dma.done %s1993, 2048
        $region80: #{tpu_custom_call.1} parent=75 // pred_fallthru
          _
      $region76: #{tpu_custom_call.1} parent=5 // pred_fallthru
        _
    $region6: #{tpu_custom_call.1} parent=1 // loop_footer
      %s23 = sadd.s32 1, %s19
    $region7: #{tpu_custom_call.1} parent=1 // loop_footer_branch
      %18 = sbr.rel target = $region3
    $region8: #{tpu_custom_call.1} parent=1 // loop_exit
      _
    %1999 = vsyncpa [#allocation4], 1
    %s2000 = scalar_lea.sflag [#allocation4], 1
    %2001 = vsyncpa %s2000, 1

</llo_original>
